<compile_context>
chip_gen: v5e
topology: v5e:2x2
jax: 0.10.0
libtpu: 0.0.40
codegen_flags: <defaults>
</compile_context>

<pallas_src>
import math
import functools

import jax
import jax.numpy as jnp
from jax.experimental import pallas as pl
from jax.experimental.pallas import tpu as pltpu


def transformer_block_kernel(
    x_ref,                       # (bb, S, D)
    wq_ref, bq_ref,              # (H, D, dk), (H, 1, dk)
    wk_ref, bk_ref,
    wv_ref, bv_ref,
    wo_ref, bo_ref,              # (H, dk, D), (1, D)
    g1_ref, be1_ref,             # layernorm 1: (1, D), (1, D)
    w1_ref, b1_ref,              # ffn fc1: (D, F), (1, F)
    w2_ref, b2_ref,              # ffn fc2: (F, D), (1, D)
    g2_ref, be2_ref,             # layernorm 2
    o_ref,                       # (bb, S, D)
    *, num_heads, d_k, eps, compute_dtype,
):
    cdt = compute_dtype
    approx = (jnp.dtype(cdt) == jnp.dtype(jnp.bfloat16))

    bb, S, D = x_ref.shape
    N = bb * S

    xf = x_ref[...].astype(jnp.float32).reshape(N, D)   # (N, D) f32 (layout no-op)
    xc = xf.astype(cdt)                                  # MXU operand dtype

    scale = 1.0 / math.sqrt(d_k)

    def head_proj(w_ref, b_ref, h):
        # (N, D) @ (D, dk) + (1, dk) -> (bb, S, dk), f32 accumulation.
        y = jnp.dot(xc, w_ref[h], preferred_element_type=jnp.float32)
        y = y + b_ref[h].astype(jnp.float32)
        return y.reshape(bb, S, d_k)

    attn_acc = None
    for h in range(num_heads):   # static unroll; no lane slicing, no concat
        qh = head_proj(wq_ref, bq_ref, h)
        kh = head_proj(wk_ref, bk_ref, h)
        vh = head_proj(wv_ref, bv_ref, h)

        # scores: contract last axes directly (no explicit K transpose)
        s = jnp.einsum('bqd,bkd->bqk', qh.astype(cdt), kh.astype(cdt),
                       preferred_element_type=jnp.float32) * scale
        s = s - jnp.max(s, axis=-1, keepdims=True)
        e = jnp.exp(s)
        p = e * pl.reciprocal(jnp.sum(e, axis=-1, keepdims=True), approx=approx)

        oh = jnp.einsum('bqk,bkd->bqd', p.astype(cdt), vh.astype(cdt),
                        preferred_element_type=jnp.float32)        # (bb, S, dk)

        # fused output projection: concat_h(oh) @ Wo == sum_h oh @ Wo[h]
        contrib = jnp.dot(oh.reshape(N, d_k).astype(cdt), wo_ref[h],
                          preferred_element_type=jnp.float32)      # (N, D)
        attn_acc = contrib if attn_acc is None else attn_acc + contrib

    attn_out = attn_acc + bo_ref[...].astype(jnp.float32)          # (N, D)

    def layer_norm(v, g_ref, b_ref):
        mu = jnp.mean(v, axis=-1, keepdims=True)
        var = jnp.mean((v - mu) ** 2, axis=-1, keepdims=True)
        return ((v - mu) * jax.lax.rsqrt(var + eps)
                * g_ref[...].astype(jnp.float32)
                + b_ref[...].astype(jnp.float32))

    # residual + norm1 (dropout == identity in eval)
    y1 = layer_norm(xf + attn_out, g1_ref, be1_ref)                # (N, D) f32

    # ---- feed-forward (bf16 operands / f32 accumulation on the fast path) ----
    h1 = jnp.dot(y1.astype(cdt), w1_ref[...], preferred_element_type=jnp.float32)
    h1 = jnp.maximum(h1 + b1_ref[...].astype(jnp.float32), 0.0)
    ffn = jnp.dot(h1.astype(cdt), w2_ref[...], preferred_element_type=jnp.float32)
    ffn = ffn + b2_ref[...].astype(jnp.float32)

    # residual + norm2
    y2 = layer_norm(y1 + ffn, g2_ref, be2_ref)
    o_ref[...] = y2.reshape(bb, S, D).astype(o_ref.dtype)


def transformer_block(x, params, *, num_heads,
                      compute_dtype=jnp.float32, block_b=None):
    """x: (B, S, D). params: dict of (in, out)-layout weights/biases (see init_params).

    compute_dtype: dtype of the MXU matmul operands (f32 for exact check,
    bf16 for the MXU-native fast path; accumulation is always f32).
    """
    B, S, D = x.shape
    assert D % num_heads == 0
    d_k = D // num_heads

    bb = B if block_b is None else block_b   # fold whole batch into one grid step
    assert B % bb == 0
    cdt = compute_dtype

    # Head-major weight restructuring (outside the kernel, done once per call).
    def qkv_w(w):   # (D, H*dk) -> (H, D, dk)
        return jnp.transpose(w.reshape(D, num_heads, d_k), (1, 0, 2)).astype(cdt)

    def qkv_b(b):   # (1, H*dk) -> (H, 1, dk)   (biases stay f32)
        return b.reshape(num_heads, 1, d_k)

    weights = [
        qkv_w(params["wq"]), qkv_b(params["bq"]),
        qkv_w(params["wk"]), qkv_b(params["bk"]),
        qkv_w(params["wv"]), qkv_b(params["bv"]),
        params["wo"].reshape(num_heads, d_k, D).astype(cdt), params["bo"],
        params["g1"], params["be1"],
        params["w1"].astype(cdt), params["b1"],
        params["w2"].astype(cdt), params["b2"],
        params["g2"], params["be2"],
    ]

    def full_spec(shape):
        nd = len(shape)
        return pl.BlockSpec(shape, lambda b, _n=nd: (0,) * _n)

    in_specs = [pl.BlockSpec((bb, S, D), lambda i: (i, 0, 0))]
    in_specs += [full_spec(w.shape) for w in weights]

    kernel = functools.partial(
        transformer_block_kernel,
        num_heads=num_heads, d_k=d_k, eps=1e-5, compute_dtype=cdt)

    return pl.pallas_call(
        kernel,
        out_shape=jax.ShapeDtypeStruct((B, S, D), x.dtype),
        grid_spec=pltpu.PrefetchScalarGridSpec(
            num_scalar_prefetch=0,
            grid=(B // bb,),
            in_specs=in_specs,
            out_specs=pl.BlockSpec((bb, S, D), lambda i: (i, 0, 0)),
        ),
        compiler_params=pltpu.CompilerParams(
            dimension_semantics=("parallel",),
            # For realistic D/F sizes also raise vmem_limit_bytes (v5e/v6e) and
            # tile the sequence / chunk F so the working set fits v7x's 64 MiB.
        ),
    )(x, *weights)


def init_params(key, d_model, d_ff):
    """Deterministic synthetic init. Weights stored as (in, out) for x @ W + b."""
    ks = jax.random.split(key, 12)

    def lin(k, fan_in, fan_out):
        kw, kb = jax.random.split(k)
        bound = 1.0 / math.sqrt(fan_in)
        w = jax.random.uniform(kw, (fan_in, fan_out), jnp.float32, -bound, bound)
        b = jax.random.uniform(kb, (1, fan_out), jnp.float32, -bound, bound)
        return w, b

    p = {}
    p["wq"], p["bq"] = lin(ks[0], d_model, d_model)
    p["wk"], p["bk"] = lin(ks[1], d_model, d_model)
    p["wv"], p["bv"] = lin(ks[2], d_model, d_model)
    p["wo"], p["bo"] = lin(ks[3], d_model, d_model)
    p["w1"], p["b1"] = lin(ks[4], d_model, d_ff)
    p["w2"], p["b2"] = lin(ks[5], d_ff, d_model)
    # LayerNorm affine params (PyTorch default: ones / zeros)
    p["g1"]  = jnp.ones((1, d_model), jnp.float32)
    p["be1"] = jnp.zeros((1, d_model), jnp.float32)
    p["g2"]  = jnp.ones((1, d_model), jnp.float32)
    p["be2"] = jnp.zeros((1, d_model), jnp.float32)
    return p


def transformer_block_ref(x, p, *, num_heads):
    """Pure-JAX reference mirroring the PyTorch module (eval mode)."""
    B, S, D = x.shape
    d_k = D // num_heads

    def lin(v, w, b):
        return v @ w + b

    q = lin(x, p["wq"], p["bq"]).reshape(B, S, num_heads, d_k).transpose(0, 2, 1, 3)
    k = lin(x, p["wk"], p["bk"]).reshape(B, S, num_heads, d_k).transpose(0, 2, 1, 3)
    v = lin(x, p["wv"], p["bv"]).reshape(B, S, num_heads, d_k).transpose(0, 2, 1, 3)
    scores = (q @ k.transpose(0, 1, 3, 2)) / math.sqrt(d_k)
    attn = jax.nn.softmax(scores, axis=-1)
    out = (attn @ v).transpose(0, 2, 1, 3).reshape(B, S, D)
    attn_proj = lin(out, p["wo"], p["bo"])

    def ln(v, g, b):
        mu = v.mean(-1, keepdims=True)
        var = ((v - mu) ** 2).mean(-1, keepdims=True)
        return (v - mu) / jnp.sqrt(var + 1e-5) * g + b

    y1 = ln(x + attn_proj, p["g1"], p["be1"])
    ffn = lin(jnp.maximum(lin(y1, p["w1"], p["b1"]), 0.0), p["w2"], p["b2"])
    return ln(y1 + ffn, p["g2"], p["be2"])


if __name__ == "__main__":
    B, S, D_MODEL, NUM_HEADS, D_FF = 2, 8, 32, 4, 64
    key = jax.random.PRNGKey(0)
    kx, kp = jax.random.split(key)
    x = jax.random.normal(kx, (B, S, D_MODEL), jnp.float32)
    params = init_params(kp, D_MODEL, D_FF)

    ref = transformer_block_ref(x, params, num_heads=NUM_HEADS)

    # 1) f32 compute path — strict check against the pure-JAX reference.
    out_f32 = jax.block_until_ready(
        transformer_block(x, params, num_heads=NUM_HEADS,
                          compute_dtype=jnp.float32))
    assert out_f32.shape == (B, S, D_MODEL)
    assert jnp.allclose(out_f32, ref, atol=1e-3, rtol=1e-3), "f32 mismatch vs reference"

    # 2) bf16 fast path (MXU-native operands, f32 accumulation, approx reciprocal)
    #    — relaxed tolerance accounts for bf16 operand rounding.
    out_bf16 = jax.block_until_ready(
        transformer_block(x, params, num_heads=NUM_HEADS,
                          compute_dtype=jnp.bfloat16))
    assert out_bf16.shape == (B, S, D_MODEL)
    assert jnp.allclose(out_bf16, ref, atol=8e-2, rtol=8e-2), "bf16 mismatch vs reference"

    print("KERNEL_OK")
</pallas_src>

<mosaic_0001>
module attributes {stable_mosaic.version = 11 : i64} {
  func.func @transformer_block_kernel(%arg0: i32, %arg1: memref<2x8x32xf32, #tpu.memory_space<vmem>>, %arg2: memref<4x32x8xf32, #tpu.memory_space<vmem>>, %arg3: memref<4x1x8xf32, #tpu.memory_space<vmem>>, %arg4: memref<4x32x8xf32, #tpu.memory_space<vmem>>, %arg5: memref<4x1x8xf32, #tpu.memory_space<vmem>>, %arg6: memref<4x32x8xf32, #tpu.memory_space<vmem>>, %arg7: memref<4x1x8xf32, #tpu.memory_space<vmem>>, %arg8: memref<4x8x32xf32, #tpu.memory_space<vmem>>, %arg9: memref<1x32xf32, #tpu.memory_space<vmem>>, %arg10: memref<1x32xf32, #tpu.memory_space<vmem>>, %arg11: memref<1x32xf32, #tpu.memory_space<vmem>>, %arg12: memref<32x64xf32, #tpu.memory_space<vmem>>, %arg13: memref<1x64xf32, #tpu.memory_space<vmem>>, %arg14: memref<64x32xf32, #tpu.memory_space<vmem>>, %arg15: memref<1x32xf32, #tpu.memory_space<vmem>>, %arg16: memref<1x32xf32, #tpu.memory_space<vmem>>, %arg17: memref<1x32xf32, #tpu.memory_space<vmem>>, %arg18: memref<2x8x32xf32, #tpu.memory_space<vmem>>) attributes {dimension_semantics = [#tpu.dimension_semantics<parallel>], iteration_bounds = array<i64: 1>, scalar_prefetch = 0 : i64, scratch_operands = 0 : i64, tpu.core_type = #tpu.core_type<tc>, window_params = [{transform_indices = @transform_0, window_bounds = array<i64: 2, 8, 32>}, {pipeline_mode = #tpu.pipeline_mode<synchronous>, transform_indices = @transform_1, window_bounds = array<i64: 4, 32, 8>}, {pipeline_mode = #tpu.pipeline_mode<synchronous>, transform_indices = @transform_2, window_bounds = array<i64: 4, 1, 8>}, {pipeline_mode = #tpu.pipeline_mode<synchronous>, transform_indices = @transform_3, window_bounds = array<i64: 4, 32, 8>}, {pipeline_mode = #tpu.pipeline_mode<synchronous>, transform_indices = @transform_4, window_bounds = array<i64: 4, 1, 8>}, {pipeline_mode = #tpu.pipeline_mode<synchronous>, transform_indices = @transform_5, window_bounds = array<i64: 4, 32, 8>}, {pipeline_mode = #tpu.pipeline_mode<synchronous>, transform_indices = @transform_6, window_bounds = array<i64: 4, 1, 8>}, {pipeline_mode = #tpu.pipeline_mode<synchronous>, transform_indices = @transform_7, window_bounds = array<i64: 4, 8, 32>}, {pipeline_mode = #tpu.pipeline_mode<synchronous>, transform_indices = @transform_8, window_bounds = array<i64: 1, 32>}, {pipeline_mode = #tpu.pipeline_mode<synchronous>, transform_indices = @transform_9, window_bounds = array<i64: 1, 32>}, {pipeline_mode = #tpu.pipeline_mode<synchronous>, transform_indices = @transform_10, window_bounds = array<i64: 1, 32>}, {pipeline_mode = #tpu.pipeline_mode<synchronous>, transform_indices = @transform_11, window_bounds = array<i64: 32, 64>}, {pipeline_mode = #tpu.pipeline_mode<synchronous>, transform_indices = @transform_12, window_bounds = array<i64: 1, 64>}, {pipeline_mode = #tpu.pipeline_mode<synchronous>, transform_indices = @transform_13, window_bounds = array<i64: 64, 32>}, {pipeline_mode = #tpu.pipeline_mode<synchronous>, transform_indices = @transform_14, window_bounds = array<i64: 1, 32>}, {pipeline_mode = #tpu.pipeline_mode<synchronous>, transform_indices = @transform_15, window_bounds = array<i64: 1, 32>}, {pipeline_mode = #tpu.pipeline_mode<synchronous>, transform_indices = @transform_16, window_bounds = array<i64: 1, 32>}, {transform_indices = @transform_17, window_bounds = array<i64: 2, 8, 32>}]} {
    %c0 = arith.constant 0 : index
    %c0_0 = arith.constant 0 : index
    %c0_1 = arith.constant 0 : index
    %0 = vector.load %arg1[%c0, %c0_0, %c0_1] : memref<2x8x32xf32, #tpu.memory_space<vmem>>, vector<2x8x32xf32>
    %1 = vector.shape_cast %0 : vector<2x8x32xf32> to vector<16x32xf32>
    %c0_2 = arith.constant 0 : index
    %c0_3 = arith.constant 0 : index
    %c0_4 = arith.constant 0 : index
    %2 = vector.load %arg2[%c0_2, %c0_3, %c0_4] : memref<4x32x8xf32, #tpu.memory_space<vmem>>, vector<1x32x8xf32>
    %3 = vector.shape_cast %2 : vector<1x32x8xf32> to vector<32x8xf32>
    %cst = arith.constant dense<0.000000e+00> : vector<16x8xf32>
    %4 = tpu.matmul %1, %3, %cst {dimension_numbers = #tpu.dot_dimension_numbers<[1], [0], [0], [1], [0, 0, 1, 1], [], []>} : vector<16x32xf32>, vector<32x8xf32>, vector<16x8xf32> -> vector<16x8xf32>
    %c0_5 = arith.constant 0 : index
    %c0_6 = arith.constant 0 : index
    %c0_7 = arith.constant 0 : index
    %5 = vector.load %arg3[%c0_5, %c0_6, %c0_7] : memref<4x1x8xf32, #tpu.memory_space<vmem>>, vector<1x1x8xf32>
    %6 = vector.shape_cast %5 : vector<1x1x8xf32> to vector<1x8xf32>
    %7 = vector.broadcast %6 : vector<1x8xf32> to vector<16x8xf32>
    %8 = arith.addf %4, %7 : vector<16x8xf32>
    %9 = vector.shape_cast %8 : vector<16x8xf32> to vector<2x8x8xf32>
    %c0_8 = arith.constant 0 : index
    %c0_9 = arith.constant 0 : index
    %c0_10 = arith.constant 0 : index
    %10 = vector.load %arg4[%c0_8, %c0_9, %c0_10] : memref<4x32x8xf32, #tpu.memory_space<vmem>>, vector<1x32x8xf32>
    %11 = vector.shape_cast %10 : vector<1x32x8xf32> to vector<32x8xf32>
    %cst_11 = arith.constant dense<0.000000e+00> : vector<16x8xf32>
    %12 = tpu.matmul %1, %11, %cst_11 {dimension_numbers = #tpu.dot_dimension_numbers<[1], [0], [0], [1], [0, 0, 1, 1], [], []>} : vector<16x32xf32>, vector<32x8xf32>, vector<16x8xf32> -> vector<16x8xf32>
    %c0_12 = arith.constant 0 : index
    %c0_13 = arith.constant 0 : index
    %c0_14 = arith.constant 0 : index
    %13 = vector.load %arg5[%c0_12, %c0_13, %c0_14] : memref<4x1x8xf32, #tpu.memory_space<vmem>>, vector<1x1x8xf32>
    %14 = vector.shape_cast %13 : vector<1x1x8xf32> to vector<1x8xf32>
    %15 = vector.broadcast %14 : vector<1x8xf32> to vector<16x8xf32>
    %16 = arith.addf %12, %15 : vector<16x8xf32>
    %17 = vector.shape_cast %16 : vector<16x8xf32> to vector<2x8x8xf32>
    %c0_15 = arith.constant 0 : index
    %c0_16 = arith.constant 0 : index
    %c0_17 = arith.constant 0 : index
    %18 = vector.load %arg6[%c0_15, %c0_16, %c0_17] : memref<4x32x8xf32, #tpu.memory_space<vmem>>, vector<1x32x8xf32>
    %19 = vector.shape_cast %18 : vector<1x32x8xf32> to vector<32x8xf32>
    %cst_18 = arith.constant dense<0.000000e+00> : vector<16x8xf32>
    %20 = tpu.matmul %1, %19, %cst_18 {dimension_numbers = #tpu.dot_dimension_numbers<[1], [0], [0], [1], [0, 0, 1, 1], [], []>} : vector<16x32xf32>, vector<32x8xf32>, vector<16x8xf32> -> vector<16x8xf32>
    %c0_19 = arith.constant 0 : index
    %c0_20 = arith.constant 0 : index
    %c0_21 = arith.constant 0 : index
    %21 = vector.load %arg7[%c0_19, %c0_20, %c0_21] : memref<4x1x8xf32, #tpu.memory_space<vmem>>, vector<1x1x8xf32>
    %22 = vector.shape_cast %21 : vector<1x1x8xf32> to vector<1x8xf32>
    %23 = vector.broadcast %22 : vector<1x8xf32> to vector<16x8xf32>
    %24 = arith.addf %20, %23 : vector<16x8xf32>
    %25 = vector.shape_cast %24 : vector<16x8xf32> to vector<2x8x8xf32>
    "tpu.trace_start"() <{level = 10 : i32, message = "bqd,bkd->bqk"}> : () -> ()
    %cst_22 = arith.constant dense<0.000000e+00> : vector<2x8x8xf32>
    %26 = tpu.matmul %9, %17, %cst_22 {dimension_numbers = #tpu.dot_dimension_numbers<[2], [2], [1], [1], [0, 0, 0, 1, 1, 1], [0], [0]>} : vector<2x8x8xf32>, vector<2x8x8xf32>, vector<2x8x8xf32> -> vector<2x8x8xf32>
    "tpu.trace_stop"() : () -> ()
    %cst_23 = arith.constant 0.353553385 : f32
    %27 = vector.broadcast %cst_23 : f32 to vector<2x8x8xf32>
    %28 = arith.mulf %26, %27 : vector<2x8x8xf32>
    %cst_24 = arith.constant dense<0xFF800000> : vector<2x8xf32>
    %29 = vector.multi_reduction <maximumf>, %28, %cst_24 [2] : vector<2x8x8xf32> to vector<2x8xf32>
    %30 = vector.shape_cast %29 : vector<2x8xf32> to vector<2x8x1xf32>
    %31 = vector.broadcast %30 : vector<2x8x1xf32> to vector<2x8x8xf32>
    %32 = arith.subf %28, %31 : vector<2x8x8xf32>
    %33 = math.exp %32 : vector<2x8x8xf32>
    %cst_25 = arith.constant dense<0.000000e+00> : vector<2x8xf32>
    %34 = vector.multi_reduction <add>, %33, %cst_25 [2] : vector<2x8x8xf32> to vector<2x8xf32>
    %35 = vector.shape_cast %34 : vector<2x8xf32> to vector<2x8x1xf32>
    %36 = tpu.reciprocal %35 : vector<2x8x1xf32> -> vector<2x8x1xf32>
    %37 = vector.broadcast %36 : vector<2x8x1xf32> to vector<2x8x8xf32>
    %38 = arith.mulf %33, %37 : vector<2x8x8xf32>
    "tpu.trace_start"() <{level = 10 : i32, message = "bqk,bkd->bqd"}> : () -> ()
    %cst_26 = arith.constant dense<0.000000e+00> : vector<2x8x8xf32>
    %39 = tpu.matmul %38, %25, %cst_26 {dimension_numbers = #tpu.dot_dimension_numbers<[2], [1], [1], [2], [0, 0, 0, 1, 1, 2], [0], [0]>} : vector<2x8x8xf32>, vector<2x8x8xf32>, vector<2x8x8xf32> -> vector<2x8x8xf32>
    "tpu.trace_stop"() : () -> ()
    %40 = vector.shape_cast %39 : vector<2x8x8xf32> to vector<16x8xf32>
    %c0_27 = arith.constant 0 : index
    %c0_28 = arith.constant 0 : index
    %c0_29 = arith.constant 0 : index
    %41 = vector.load %arg8[%c0_27, %c0_28, %c0_29] : memref<4x8x32xf32, #tpu.memory_space<vmem>>, vector<1x8x32xf32>
    %42 = vector.shape_cast %41 : vector<1x8x32xf32> to vector<8x32xf32>
    %cst_30 = arith.constant dense<0.000000e+00> : vector<16x32xf32>
    %43 = tpu.matmul %40, %42, %cst_30 {dimension_numbers = #tpu.dot_dimension_numbers<[1], [0], [0], [1], [0, 0, 1, 1], [], []>} : vector<16x8xf32>, vector<8x32xf32>, vector<16x32xf32> -> vector<16x32xf32>
    %c1 = arith.constant 1 : index
    %c0_31 = arith.constant 0 : index
    %c0_32 = arith.constant 0 : index
    %44 = vector.load %arg2[%c1, %c0_31, %c0_32] : memref<4x32x8xf32, #tpu.memory_space<vmem>>, vector<1x32x8xf32>
    %45 = vector.shape_cast %44 : vector<1x32x8xf32> to vector<32x8xf32>
    %cst_33 = arith.constant dense<0.000000e+00> : vector<16x8xf32>
    %46 = tpu.matmul %1, %45, %cst_33 {dimension_numbers = #tpu.dot_dimension_numbers<[1], [0], [0], [1], [0, 0, 1, 1], [], []>} : vector<16x32xf32>, vector<32x8xf32>, vector<16x8xf32> -> vector<16x8xf32>
    %c1_34 = arith.constant 1 : index
    %c0_35 = arith.constant 0 : index
    %c0_36 = arith.constant 0 : index
    %47 = vector.load %arg3[%c1_34, %c0_35, %c0_36] : memref<4x1x8xf32, #tpu.memory_space<vmem>>, vector<1x1x8xf32>
    %48 = vector.shape_cast %47 : vector<1x1x8xf32> to vector<1x8xf32>
    %49 = vector.broadcast %48 : vector<1x8xf32> to vector<16x8xf32>
    %50 = arith.addf %46, %49 : vector<16x8xf32>
    %51 = vector.shape_cast %50 : vector<16x8xf32> to vector<2x8x8xf32>
    %c1_37 = arith.constant 1 : index
    %c0_38 = arith.constant 0 : index
    %c0_39 = arith.constant 0 : index
    %52 = vector.load %arg4[%c1_37, %c0_38, %c0_39] : memref<4x32x8xf32, #tpu.memory_space<vmem>>, vector<1x32x8xf32>
    %53 = vector.shape_cast %52 : vector<1x32x8xf32> to vector<32x8xf32>
    %cst_40 = arith.constant dense<0.000000e+00> : vector<16x8xf32>
    %54 = tpu.matmul %1, %53, %cst_40 {dimension_numbers = #tpu.dot_dimension_numbers<[1], [0], [0], [1], [0, 0, 1, 1], [], []>} : vector<16x32xf32>, vector<32x8xf32>, vector<16x8xf32> -> vector<16x8xf32>
    %c1_41 = arith.constant 1 : index
    %c0_42 = arith.constant 0 : index
    %c0_43 = arith.constant 0 : index
    %55 = vector.load %arg5[%c1_41, %c0_42, %c0_43] : memref<4x1x8xf32, #tpu.memory_space<vmem>>, vector<1x1x8xf32>
    %56 = vector.shape_cast %55 : vector<1x1x8xf32> to vector<1x8xf32>
    %57 = vector.broadcast %56 : vector<1x8xf32> to vector<16x8xf32>
    %58 = arith.addf %54, %57 : vector<16x8xf32>
    %59 = vector.shape_cast %58 : vector<16x8xf32> to vector<2x8x8xf32>
    %c1_44 = arith.constant 1 : index
    %c0_45 = arith.constant 0 : index
    %c0_46 = arith.constant 0 : index
    %60 = vector.load %arg6[%c1_44, %c0_45, %c0_46] : memref<4x32x8xf32, #tpu.memory_space<vmem>>, vector<1x32x8xf32>
    %61 = vector.shape_cast %60 : vector<1x32x8xf32> to vector<32x8xf32>
    %cst_47 = arith.constant dense<0.000000e+00> : vector<16x8xf32>
    %62 = tpu.matmul %1, %61, %cst_47 {dimension_numbers = #tpu.dot_dimension_numbers<[1], [0], [0], [1], [0, 0, 1, 1], [], []>} : vector<16x32xf32>, vector<32x8xf32>, vector<16x8xf32> -> vector<16x8xf32>
    %c1_48 = arith.constant 1 : index
    %c0_49 = arith.constant 0 : index
    %c0_50 = arith.constant 0 : index
    %63 = vector.load %arg7[%c1_48, %c0_49, %c0_50] : memref<4x1x8xf32, #tpu.memory_space<vmem>>, vector<1x1x8xf32>
    %64 = vector.shape_cast %63 : vector<1x1x8xf32> to vector<1x8xf32>
    %65 = vector.broadcast %64 : vector<1x8xf32> to vector<16x8xf32>
    %66 = arith.addf %62, %65 : vector<16x8xf32>
    %67 = vector.shape_cast %66 : vector<16x8xf32> to vector<2x8x8xf32>
    "tpu.trace_start"() <{level = 10 : i32, message = "bqd,bkd->bqk"}> : () -> ()
    %cst_51 = arith.constant dense<0.000000e+00> : vector<2x8x8xf32>
    %68 = tpu.matmul %51, %59, %cst_51 {dimension_numbers = #tpu.dot_dimension_numbers<[2], [2], [1], [1], [0, 0, 0, 1, 1, 1], [0], [0]>} : vector<2x8x8xf32>, vector<2x8x8xf32>, vector<2x8x8xf32> -> vector<2x8x8xf32>
    "tpu.trace_stop"() : () -> ()
    %cst_52 = arith.constant 0.353553385 : f32
    %69 = vector.broadcast %cst_52 : f32 to vector<2x8x8xf32>
    %70 = arith.mulf %68, %69 : vector<2x8x8xf32>
    %cst_53 = arith.constant dense<0xFF800000> : vector<2x8xf32>
    %71 = vector.multi_reduction <maximumf>, %70, %cst_53 [2] : vector<2x8x8xf32> to vector<2x8xf32>
    %72 = vector.shape_cast %71 : vector<2x8xf32> to vector<2x8x1xf32>
    %73 = vector.broadcast %72 : vector<2x8x1xf32> to vector<2x8x8xf32>
    %74 = arith.subf %70, %73 : vector<2x8x8xf32>
    %75 = math.exp %74 : vector<2x8x8xf32>
    %cst_54 = arith.constant dense<0.000000e+00> : vector<2x8xf32>
    %76 = vector.multi_reduction <add>, %75, %cst_54 [2] : vector<2x8x8xf32> to vector<2x8xf32>
    %77 = vector.shape_cast %76 : vector<2x8xf32> to vector<2x8x1xf32>
    %78 = tpu.reciprocal %77 : vector<2x8x1xf32> -> vector<2x8x1xf32>
    %79 = vector.broadcast %78 : vector<2x8x1xf32> to vector<2x8x8xf32>
    %80 = arith.mulf %75, %79 : vector<2x8x8xf32>
    "tpu.trace_start"() <{level = 10 : i32, message = "bqk,bkd->bqd"}> : () -> ()
    %cst_55 = arith.constant dense<0.000000e+00> : vector<2x8x8xf32>
    %81 = tpu.matmul %80, %67, %cst_55 {dimension_numbers = #tpu.dot_dimension_numbers<[2], [1], [1], [2], [0, 0, 0, 1, 1, 2], [0], [0]>} : vector<2x8x8xf32>, vector<2x8x8xf32>, vector<2x8x8xf32> -> vector<2x8x8xf32>
    "tpu.trace_stop"() : () -> ()
    %82 = vector.shape_cast %81 : vector<2x8x8xf32> to vector<16x8xf32>
    %c1_56 = arith.constant 1 : index
    %c0_57 = arith.constant 0 : index
    %c0_58 = arith.constant 0 : index
    %83 = vector.load %arg8[%c1_56, %c0_57, %c0_58] : memref<4x8x32xf32, #tpu.memory_space<vmem>>, vector<1x8x32xf32>
    %84 = vector.shape_cast %83 : vector<1x8x32xf32> to vector<8x32xf32>
    %cst_59 = arith.constant dense<0.000000e+00> : vector<16x32xf32>
    %85 = tpu.matmul %82, %84, %cst_59 {dimension_numbers = #tpu.dot_dimension_numbers<[1], [0], [0], [1], [0, 0, 1, 1], [], []>} : vector<16x8xf32>, vector<8x32xf32>, vector<16x32xf32> -> vector<16x32xf32>
    %86 = arith.addf %43, %85 : vector<16x32xf32>
    %c2 = arith.constant 2 : index
    %c0_60 = arith.constant 0 : index
    %c0_61 = arith.constant 0 : index
    %87 = vector.load %arg2[%c2, %c0_60, %c0_61] : memref<4x32x8xf32, #tpu.memory_space<vmem>>, vector<1x32x8xf32>
    %88 = vector.shape_cast %87 : vector<1x32x8xf32> to vector<32x8xf32>
    %cst_62 = arith.constant dense<0.000000e+00> : vector<16x8xf32>
    %89 = tpu.matmul %1, %88, %cst_62 {dimension_numbers = #tpu.dot_dimension_numbers<[1], [0], [0], [1], [0, 0, 1, 1], [], []>} : vector<16x32xf32>, vector<32x8xf32>, vector<16x8xf32> -> vector<16x8xf32>
    %c2_63 = arith.constant 2 : index
    %c0_64 = arith.constant 0 : index
    %c0_65 = arith.constant 0 : index
    %90 = vector.load %arg3[%c2_63, %c0_64, %c0_65] : memref<4x1x8xf32, #tpu.memory_space<vmem>>, vector<1x1x8xf32>
    %91 = vector.shape_cast %90 : vector<1x1x8xf32> to vector<1x8xf32>
    %92 = vector.broadcast %91 : vector<1x8xf32> to vector<16x8xf32>
    %93 = arith.addf %89, %92 : vector<16x8xf32>
    %94 = vector.shape_cast %93 : vector<16x8xf32> to vector<2x8x8xf32>
    %c2_66 = arith.constant 2 : index
    %c0_67 = arith.constant 0 : index
    %c0_68 = arith.constant 0 : index
    %95 = vector.load %arg4[%c2_66, %c0_67, %c0_68] : memref<4x32x8xf32, #tpu.memory_space<vmem>>, vector<1x32x8xf32>
    %96 = vector.shape_cast %95 : vector<1x32x8xf32> to vector<32x8xf32>
    %cst_69 = arith.constant dense<0.000000e+00> : vector<16x8xf32>
    %97 = tpu.matmul %1, %96, %cst_69 {dimension_numbers = #tpu.dot_dimension_numbers<[1], [0], [0], [1], [0, 0, 1, 1], [], []>} : vector<16x32xf32>, vector<32x8xf32>, vector<16x8xf32> -> vector<16x8xf32>
    %c2_70 = arith.constant 2 : index
    %c0_71 = arith.constant 0 : index
    %c0_72 = arith.constant 0 : index
    %98 = vector.load %arg5[%c2_70, %c0_71, %c0_72] : memref<4x1x8xf32, #tpu.memory_space<vmem>>, vector<1x1x8xf32>
    %99 = vector.shape_cast %98 : vector<1x1x8xf32> to vector<1x8xf32>
    %100 = vector.broadcast %99 : vector<1x8xf32> to vector<16x8xf32>
    %101 = arith.addf %97, %100 : vector<16x8xf32>
    %102 = vector.shape_cast %101 : vector<16x8xf32> to vector<2x8x8xf32>
    %c2_73 = arith.constant 2 : index
    %c0_74 = arith.constant 0 : index
    %c0_75 = arith.constant 0 : index
    %103 = vector.load %arg6[%c2_73, %c0_74, %c0_75] : memref<4x32x8xf32, #tpu.memory_space<vmem>>, vector<1x32x8xf32>
    %104 = vector.shape_cast %103 : vector<1x32x8xf32> to vector<32x8xf32>
    %cst_76 = arith.constant dense<0.000000e+00> : vector<16x8xf32>
    %105 = tpu.matmul %1, %104, %cst_76 {dimension_numbers = #tpu.dot_dimension_numbers<[1], [0], [0], [1], [0, 0, 1, 1], [], []>} : vector<16x32xf32>, vector<32x8xf32>, vector<16x8xf32> -> vector<16x8xf32>
    %c2_77 = arith.constant 2 : index
    %c0_78 = arith.constant 0 : index
    %c0_79 = arith.constant 0 : index
    %106 = vector.load %arg7[%c2_77, %c0_78, %c0_79] : memref<4x1x8xf32, #tpu.memory_space<vmem>>, vector<1x1x8xf32>
    %107 = vector.shape_cast %106 : vector<1x1x8xf32> to vector<1x8xf32>
    %108 = vector.broadcast %107 : vector<1x8xf32> to vector<16x8xf32>
    %109 = arith.addf %105, %108 : vector<16x8xf32>
    %110 = vector.shape_cast %109 : vector<16x8xf32> to vector<2x8x8xf32>
    "tpu.trace_start"() <{level = 10 : i32, message = "bqd,bkd->bqk"}> : () -> ()
    %cst_80 = arith.constant dense<0.000000e+00> : vector<2x8x8xf32>
    %111 = tpu.matmul %94, %102, %cst_80 {dimension_numbers = #tpu.dot_dimension_numbers<[2], [2], [1], [1], [0, 0, 0, 1, 1, 1], [0], [0]>} : vector<2x8x8xf32>, vector<2x8x8xf32>, vector<2x8x8xf32> -> vector<2x8x8xf32>
    "tpu.trace_stop"() : () -> ()
    %cst_81 = arith.constant 0.353553385 : f32
    %112 = vector.broadcast %cst_81 : f32 to vector<2x8x8xf32>
    %113 = arith.mulf %111, %112 : vector<2x8x8xf32>
    %cst_82 = arith.constant dense<0xFF800000> : vector<2x8xf32>
    %114 = vector.multi_reduction <maximumf>, %113, %cst_82 [2] : vector<2x8x8xf32> to vector<2x8xf32>
    %115 = vector.shape_cast %114 : vector<2x8xf32> to vector<2x8x1xf32>
    %116 = vector.broadcast %115 : vector<2x8x1xf32> to vector<2x8x8xf32>
    %117 = arith.subf %113, %116 : vector<2x8x8xf32>
    %118 = math.exp %117 : vector<2x8x8xf32>
    %cst_83 = arith.constant dense<0.000000e+00> : vector<2x8xf32>
    %119 = vector.multi_reduction <add>, %118, %cst_83 [2] : vector<2x8x8xf32> to vector<2x8xf32>
    %120 = vector.shape_cast %119 : vector<2x8xf32> to vector<2x8x1xf32>
    %121 = tpu.reciprocal %120 : vector<2x8x1xf32> -> vector<2x8x1xf32>
    %122 = vector.broadcast %121 : vector<2x8x1xf32> to vector<2x8x8xf32>
    %123 = arith.mulf %118, %122 : vector<2x8x8xf32>
    "tpu.trace_start"() <{level = 10 : i32, message = "bqk,bkd->bqd"}> : () -> ()
    %cst_84 = arith.constant dense<0.000000e+00> : vector<2x8x8xf32>
    %124 = tpu.matmul %123, %110, %cst_84 {dimension_numbers = #tpu.dot_dimension_numbers<[2], [1], [1], [2], [0, 0, 0, 1, 1, 2], [0], [0]>} : vector<2x8x8xf32>, vector<2x8x8xf32>, vector<2x8x8xf32> -> vector<2x8x8xf32>
    "tpu.trace_stop"() : () -> ()
    %125 = vector.shape_cast %124 : vector<2x8x8xf32> to vector<16x8xf32>
    %c2_85 = arith.constant 2 : index
    %c0_86 = arith.constant 0 : index
    %c0_87 = arith.constant 0 : index
    %126 = vector.load %arg8[%c2_85, %c0_86, %c0_87] : memref<4x8x32xf32, #tpu.memory_space<vmem>>, vector<1x8x32xf32>
    %127 = vector.shape_cast %126 : vector<1x8x32xf32> to vector<8x32xf32>
    %cst_88 = arith.constant dense<0.000000e+00> : vector<16x32xf32>
    %128 = tpu.matmul %125, %127, %cst_88 {dimension_numbers = #tpu.dot_dimension_numbers<[1], [0], [0], [1], [0, 0, 1, 1], [], []>} : vector<16x8xf32>, vector<8x32xf32>, vector<16x32xf32> -> vector<16x32xf32>
    %129 = arith.addf %86, %128 : vector<16x32xf32>
    %c3 = arith.constant 3 : index
    %c0_89 = arith.constant 0 : index
    %c0_90 = arith.constant 0 : index
    %130 = vector.load %arg2[%c3, %c0_89, %c0_90] : memref<4x32x8xf32, #tpu.memory_space<vmem>>, vector<1x32x8xf32>
    %131 = vector.shape_cast %130 : vector<1x32x8xf32> to vector<32x8xf32>
    %cst_91 = arith.constant dense<0.000000e+00> : vector<16x8xf32>
    %132 = tpu.matmul %1, %131, %cst_91 {dimension_numbers = #tpu.dot_dimension_numbers<[1], [0], [0], [1], [0, 0, 1, 1], [], []>} : vector<16x32xf32>, vector<32x8xf32>, vector<16x8xf32> -> vector<16x8xf32>
    %c3_92 = arith.constant 3 : index
    %c0_93 = arith.constant 0 : index
    %c0_94 = arith.constant 0 : index
    %133 = vector.load %arg3[%c3_92, %c0_93, %c0_94] : memref<4x1x8xf32, #tpu.memory_space<vmem>>, vector<1x1x8xf32>
    %134 = vector.shape_cast %133 : vector<1x1x8xf32> to vector<1x8xf32>
    %135 = vector.broadcast %134 : vector<1x8xf32> to vector<16x8xf32>
    %136 = arith.addf %132, %135 : vector<16x8xf32>
    %137 = vector.shape_cast %136 : vector<16x8xf32> to vector<2x8x8xf32>
    %c3_95 = arith.constant 3 : index
    %c0_96 = arith.constant 0 : index
    %c0_97 = arith.constant 0 : index
    %138 = vector.load %arg4[%c3_95, %c0_96, %c0_97] : memref<4x32x8xf32, #tpu.memory_space<vmem>>, vector<1x32x8xf32>
    %139 = vector.shape_cast %138 : vector<1x32x8xf32> to vector<32x8xf32>
    %cst_98 = arith.constant dense<0.000000e+00> : vector<16x8xf32>
    %140 = tpu.matmul %1, %139, %cst_98 {dimension_numbers = #tpu.dot_dimension_numbers<[1], [0], [0], [1], [0, 0, 1, 1], [], []>} : vector<16x32xf32>, vector<32x8xf32>, vector<16x8xf32> -> vector<16x8xf32>
    %c3_99 = arith.constant 3 : index
    %c0_100 = arith.constant 0 : index
    %c0_101 = arith.constant 0 : index
    %141 = vector.load %arg5[%c3_99, %c0_100, %c0_101] : memref<4x1x8xf32, #tpu.memory_space<vmem>>, vector<1x1x8xf32>
    %142 = vector.shape_cast %141 : vector<1x1x8xf32> to vector<1x8xf32>
    %143 = vector.broadcast %142 : vector<1x8xf32> to vector<16x8xf32>
    %144 = arith.addf %140, %143 : vector<16x8xf32>
    %145 = vector.shape_cast %144 : vector<16x8xf32> to vector<2x8x8xf32>
    %c3_102 = arith.constant 3 : index
    %c0_103 = arith.constant 0 : index
    %c0_104 = arith.constant 0 : index
    %146 = vector.load %arg6[%c3_102, %c0_103, %c0_104] : memref<4x32x8xf32, #tpu.memory_space<vmem>>, vector<1x32x8xf32>
    %147 = vector.shape_cast %146 : vector<1x32x8xf32> to vector<32x8xf32>
    %cst_105 = arith.constant dense<0.000000e+00> : vector<16x8xf32>
    %148 = tpu.matmul %1, %147, %cst_105 {dimension_numbers = #tpu.dot_dimension_numbers<[1], [0], [0], [1], [0, 0, 1, 1], [], []>} : vector<16x32xf32>, vector<32x8xf32>, vector<16x8xf32> -> vector<16x8xf32>
    %c3_106 = arith.constant 3 : index
    %c0_107 = arith.constant 0 : index
    %c0_108 = arith.constant 0 : index
    %149 = vector.load %arg7[%c3_106, %c0_107, %c0_108] : memref<4x1x8xf32, #tpu.memory_space<vmem>>, vector<1x1x8xf32>
    %150 = vector.shape_cast %149 : vector<1x1x8xf32> to vector<1x8xf32>
    %151 = vector.broadcast %150 : vector<1x8xf32> to vector<16x8xf32>
    %152 = arith.addf %148, %151 : vector<16x8xf32>
    %153 = vector.shape_cast %152 : vector<16x8xf32> to vector<2x8x8xf32>
    "tpu.trace_start"() <{level = 10 : i32, message = "bqd,bkd->bqk"}> : () -> ()
    %cst_109 = arith.constant dense<0.000000e+00> : vector<2x8x8xf32>
    %154 = tpu.matmul %137, %145, %cst_109 {dimension_numbers = #tpu.dot_dimension_numbers<[2], [2], [1], [1], [0, 0, 0, 1, 1, 1], [0], [0]>} : vector<2x8x8xf32>, vector<2x8x8xf32>, vector<2x8x8xf32> -> vector<2x8x8xf32>
    "tpu.trace_stop"() : () -> ()
    %cst_110 = arith.constant 0.353553385 : f32
    %155 = vector.broadcast %cst_110 : f32 to vector<2x8x8xf32>
    %156 = arith.mulf %154, %155 : vector<2x8x8xf32>
    %cst_111 = arith.constant dense<0xFF800000> : vector<2x8xf32>
    %157 = vector.multi_reduction <maximumf>, %156, %cst_111 [2] : vector<2x8x8xf32> to vector<2x8xf32>
    %158 = vector.shape_cast %157 : vector<2x8xf32> to vector<2x8x1xf32>
    %159 = vector.broadcast %158 : vector<2x8x1xf32> to vector<2x8x8xf32>
    %160 = arith.subf %156, %159 : vector<2x8x8xf32>
    %161 = math.exp %160 : vector<2x8x8xf32>
    %cst_112 = arith.constant dense<0.000000e+00> : vector<2x8xf32>
    %162 = vector.multi_reduction <add>, %161, %cst_112 [2] : vector<2x8x8xf32> to vector<2x8xf32>
    %163 = vector.shape_cast %162 : vector<2x8xf32> to vector<2x8x1xf32>
    %164 = tpu.reciprocal %163 : vector<2x8x1xf32> -> vector<2x8x1xf32>
    %165 = vector.broadcast %164 : vector<2x8x1xf32> to vector<2x8x8xf32>
    %166 = arith.mulf %161, %165 : vector<2x8x8xf32>
    "tpu.trace_start"() <{level = 10 : i32, message = "bqk,bkd->bqd"}> : () -> ()
    %cst_113 = arith.constant dense<0.000000e+00> : vector<2x8x8xf32>
    %167 = tpu.matmul %166, %153, %cst_113 {dimension_numbers = #tpu.dot_dimension_numbers<[2], [1], [1], [2], [0, 0, 0, 1, 1, 2], [0], [0]>} : vector<2x8x8xf32>, vector<2x8x8xf32>, vector<2x8x8xf32> -> vector<2x8x8xf32>
    "tpu.trace_stop"() : () -> ()
    %168 = vector.shape_cast %167 : vector<2x8x8xf32> to vector<16x8xf32>
    %c3_114 = arith.constant 3 : index
    %c0_115 = arith.constant 0 : index
    %c0_116 = arith.constant 0 : index
    %169 = vector.load %arg8[%c3_114, %c0_115, %c0_116] : memref<4x8x32xf32, #tpu.memory_space<vmem>>, vector<1x8x32xf32>
    %170 = vector.shape_cast %169 : vector<1x8x32xf32> to vector<8x32xf32>
    %cst_117 = arith.constant dense<0.000000e+00> : vector<16x32xf32>
    %171 = tpu.matmul %168, %170, %cst_117 {dimension_numbers = #tpu.dot_dimension_numbers<[1], [0], [0], [1], [0, 0, 1, 1], [], []>} : vector<16x8xf32>, vector<8x32xf32>, vector<16x32xf32> -> vector<16x32xf32>
    %172 = arith.addf %129, %171 : vector<16x32xf32>
    %c0_118 = arith.constant 0 : index
    %c0_119 = arith.constant 0 : index
    %173 = vector.load %arg9[%c0_118, %c0_119] : memref<1x32xf32, #tpu.memory_space<vmem>>, vector<1x32xf32>
    %174 = vector.broadcast %173 : vector<1x32xf32> to vector<16x32xf32>
    %175 = arith.addf %172, %174 : vector<16x32xf32>
    %176 = arith.addf %1, %175 : vector<16x32xf32>
    %cst_120 = arith.constant dense<0.000000e+00> : vector<16xf32>
    %177 = vector.multi_reduction <add>, %176, %cst_120 [1] : vector<16x32xf32> to vector<16xf32>
    %178 = vector.shape_cast %177 : vector<16xf32> to vector<16x1xf32>
    %cst_121 = arith.constant 3.200000e+01 : f32
    %179 = vector.broadcast %cst_121 : f32 to vector<16x1xf32>
    %180 = arith.divf %178, %179 : vector<16x1xf32>
    %181 = vector.broadcast %180 : vector<16x1xf32> to vector<16x32xf32>
    %182 = arith.subf %176, %181 : vector<16x32xf32>
    %183 = arith.mulf %182, %182 : vector<16x32xf32>
    %cst_122 = arith.constant dense<0.000000e+00> : vector<16xf32>
    %184 = vector.multi_reduction <add>, %183, %cst_122 [1] : vector<16x32xf32> to vector<16xf32>
    %185 = vector.shape_cast %184 : vector<16xf32> to vector<16x1xf32>
    %cst_123 = arith.constant 3.200000e+01 : f32
    %186 = vector.broadcast %cst_123 : f32 to vector<16x1xf32>
    %187 = arith.divf %185, %186 : vector<16x1xf32>
    %188 = vector.broadcast %180 : vector<16x1xf32> to vector<16x32xf32>
    %189 = arith.subf %176, %188 : vector<16x32xf32>
    %cst_124 = arith.constant 9.99999974E-6 : f32
    %190 = vector.broadcast %cst_124 : f32 to vector<16x1xf32>
    %191 = arith.addf %187, %190 : vector<16x1xf32>
    %192 = math.rsqrt %191 : vector<16x1xf32>
    %193 = vector.broadcast %192 : vector<16x1xf32> to vector<16x32xf32>
    %194 = arith.mulf %189, %193 : vector<16x32xf32>
    %c0_125 = arith.constant 0 : index
    %c0_126 = arith.constant 0 : index
    %195 = vector.load %arg10[%c0_125, %c0_126] : memref<1x32xf32, #tpu.memory_space<vmem>>, vector<1x32xf32>
    %196 = vector.broadcast %195 : vector<1x32xf32> to vector<16x32xf32>
    %197 = arith.mulf %194, %196 : vector<16x32xf32>
    %c0_127 = arith.constant 0 : index
    %c0_128 = arith.constant 0 : index
    %198 = vector.load %arg11[%c0_127, %c0_128] : memref<1x32xf32, #tpu.memory_space<vmem>>, vector<1x32xf32>
    %199 = vector.broadcast %198 : vector<1x32xf32> to vector<16x32xf32>
    %200 = arith.addf %197, %199 : vector<16x32xf32>
    %c0_129 = arith.constant 0 : index
    %c0_130 = arith.constant 0 : index
    %201 = vector.load %arg12[%c0_129, %c0_130] : memref<32x64xf32, #tpu.memory_space<vmem>>, vector<32x64xf32>
    %cst_131 = arith.constant dense<0.000000e+00> : vector<16x64xf32>
    %202 = tpu.matmul %200, %201, %cst_131 {dimension_numbers = #tpu.dot_dimension_numbers<[1], [0], [0], [1], [0, 0, 1, 1], [], []>} : vector<16x32xf32>, vector<32x64xf32>, vector<16x64xf32> -> vector<16x64xf32>
    %c0_132 = arith.constant 0 : index
    %c0_133 = arith.constant 0 : index
    %203 = vector.load %arg13[%c0_132, %c0_133] : memref<1x64xf32, #tpu.memory_space<vmem>>, vector<1x64xf32>
    %204 = vector.broadcast %203 : vector<1x64xf32> to vector<16x64xf32>
    %205 = arith.addf %202, %204 : vector<16x64xf32>
    %cst_134 = arith.constant 0.000000e+00 : f32
    %206 = vector.broadcast %cst_134 : f32 to vector<16x64xf32>
    %207 = arith.maximumf %205, %206 : vector<16x64xf32>
    %c0_135 = arith.constant 0 : index
    %c0_136 = arith.constant 0 : index
    %208 = vector.load %arg14[%c0_135, %c0_136] : memref<64x32xf32, #tpu.memory_space<vmem>>, vector<64x32xf32>
    %cst_137 = arith.constant dense<0.000000e+00> : vector<16x32xf32>
    %209 = tpu.matmul %207, %208, %cst_137 {dimension_numbers = #tpu.dot_dimension_numbers<[1], [0], [0], [1], [0, 0, 1, 1], [], []>} : vector<16x64xf32>, vector<64x32xf32>, vector<16x32xf32> -> vector<16x32xf32>
    %c0_138 = arith.constant 0 : index
    %c0_139 = arith.constant 0 : index
    %210 = vector.load %arg15[%c0_138, %c0_139] : memref<1x32xf32, #tpu.memory_space<vmem>>, vector<1x32xf32>
    %211 = vector.broadcast %210 : vector<1x32xf32> to vector<16x32xf32>
    %212 = arith.addf %209, %211 : vector<16x32xf32>
    %213 = arith.addf %200, %212 : vector<16x32xf32>
    %cst_140 = arith.constant dense<0.000000e+00> : vector<16xf32>
    %214 = vector.multi_reduction <add>, %213, %cst_140 [1] : vector<16x32xf32> to vector<16xf32>
    %215 = vector.shape_cast %214 : vector<16xf32> to vector<16x1xf32>
    %cst_141 = arith.constant 3.200000e+01 : f32
    %216 = vector.broadcast %cst_141 : f32 to vector<16x1xf32>
    %217 = arith.divf %215, %216 : vector<16x1xf32>
    %218 = vector.broadcast %217 : vector<16x1xf32> to vector<16x32xf32>
    %219 = arith.subf %213, %218 : vector<16x32xf32>
    %220 = arith.mulf %219, %219 : vector<16x32xf32>
    %cst_142 = arith.constant dense<0.000000e+00> : vector<16xf32>
    %221 = vector.multi_reduction <add>, %220, %cst_142 [1] : vector<16x32xf32> to vector<16xf32>
    %222 = vector.shape_cast %221 : vector<16xf32> to vector<16x1xf32>
    %cst_143 = arith.constant 3.200000e+01 : f32
    %223 = vector.broadcast %cst_143 : f32 to vector<16x1xf32>
    %224 = arith.divf %222, %223 : vector<16x1xf32>
    %225 = vector.broadcast %217 : vector<16x1xf32> to vector<16x32xf32>
    %226 = arith.subf %213, %225 : vector<16x32xf32>
    %cst_144 = arith.constant 9.99999974E-6 : f32
    %227 = vector.broadcast %cst_144 : f32 to vector<16x1xf32>
    %228 = arith.addf %224, %227 : vector<16x1xf32>
    %229 = math.rsqrt %228 : vector<16x1xf32>
    %230 = vector.broadcast %229 : vector<16x1xf32> to vector<16x32xf32>
    %231 = arith.mulf %226, %230 : vector<16x32xf32>
    %c0_145 = arith.constant 0 : index
    %c0_146 = arith.constant 0 : index
    %232 = vector.load %arg16[%c0_145, %c0_146] : memref<1x32xf32, #tpu.memory_space<vmem>>, vector<1x32xf32>
    %233 = vector.broadcast %232 : vector<1x32xf32> to vector<16x32xf32>
    %234 = arith.mulf %231, %233 : vector<16x32xf32>
    %c0_147 = arith.constant 0 : index
    %c0_148 = arith.constant 0 : index
    %235 = vector.load %arg17[%c0_147, %c0_148] : memref<1x32xf32, #tpu.memory_space<vmem>>, vector<1x32xf32>
    %236 = vector.broadcast %235 : vector<1x32xf32> to vector<16x32xf32>
    %237 = arith.addf %234, %236 : vector<16x32xf32>
    %238 = vector.shape_cast %237 : vector<16x32xf32> to vector<2x8x32xf32>
    %c0_149 = arith.constant 0 : index
    %c0_150 = arith.constant 0 : index
    %c0_151 = arith.constant 0 : index
    %239 = vector.load %arg18[%c0_149, %c0_150, %c0_151] : memref<2x8x32xf32, #tpu.memory_space<vmem>>, vector<2x8x32xf32>
    tpu.vector_store %arg18[%c0_149, %c0_150, %c0_151], %238 {strides = array<i32>} : memref<2x8x32xf32, #tpu.memory_space<vmem>>, vector<2x8x32xf32>,
    return
  }
  func.func @transform_0(%arg0: i32) -> (i32, i32, i32) {
    %c0_i32 = arith.constant 0 : i32
    %c0_i32_0 = arith.constant 0 : i32
    %c0_i32_1 = arith.constant 0 : i32
    return %arg0, %c0_i32, %c0_i32_0 : i32, i32, i32
  }
  func.func @transform_1(%arg0: i32) -> (i32, i32, i32) {
    %c0_i32 = arith.constant 0 : i32
    %c0_i32_0 = arith.constant 0 : i32
    %c0_i32_1 = arith.constant 0 : i32
    %c0_i32_2 = arith.constant 0 : i32
    return %c0_i32, %c0_i32_0, %c0_i32_1 : i32, i32, i32
  }
  func.func @transform_2(%arg0: i32) -> (i32, i32, i32) {
    %c0_i32 = arith.constant 0 : i32
    %c0_i32_0 = arith.constant 0 : i32
    %c0_i32_1 = arith.constant 0 : i32
    %c0_i32_2 = arith.constant 0 : i32
    return %c0_i32, %c0_i32_0, %c0_i32_1 : i32, i32, i32
  }
  func.func @transform_3(%arg0: i32) -> (i32, i32, i32) {
    %c0_i32 = arith.constant 0 : i32
    %c0_i32_0 = arith.constant 0 : i32
    %c0_i32_1 = arith.constant 0 : i32
    %c0_i32_2 = arith.constant 0 : i32
    return %c0_i32, %c0_i32_0, %c0_i32_1 : i32, i32, i32
  }
  func.func @transform_4(%arg0: i32) -> (i32, i32, i32) {
    %c0_i32 = arith.constant 0 : i32
    %c0_i32_0 = arith.constant 0 : i32
    %c0_i32_1 = arith.constant 0 : i32
    %c0_i32_2 = arith.constant 0 : i32
    return %c0_i32, %c0_i32_0, %c0_i32_1 : i32, i32, i32
  }
  func.func @transform_5(%arg0: i32) -> (i32, i32, i32) {
    %c0_i32 = arith.constant 0 : i32
    %c0_i32_0 = arith.constant 0 : i32
    %c0_i32_1 = arith.constant 0 : i32
    %c0_i32_2 = arith.constant 0 : i32
    return %c0_i32, %c0_i32_0, %c0_i32_1 : i32, i32, i32
  }
  func.func @transform_6(%arg0: i32) -> (i32, i32, i32) {
    %c0_i32 = arith.constant 0 : i32
    %c0_i32_0 = arith.constant 0 : i32
    %c0_i32_1 = arith.constant 0 : i32
    %c0_i32_2 = arith.constant 0 : i32
    return %c0_i32, %c0_i32_0, %c0_i32_1 : i32, i32, i32
  }
  func.func @transform_7(%arg0: i32) -> (i32, i32, i32) {
    %c0_i32 = arith.constant 0 : i32
    %c0_i32_0 = arith.constant 0 : i32
    %c0_i32_1 = arith.constant 0 : i32
    %c0_i32_2 = arith.constant 0 : i32
    return %c0_i32, %c0_i32_0, %c0_i32_1 : i32, i32, i32
  }
  func.func @transform_8(%arg0: i32) -> (i32, i32) {
    %c0_i32 = arith.constant 0 : i32
    %c0_i32_0 = arith.constant 0 : i32
    %c0_i32_1 = arith.constant 0 : i32
    return %c0_i32, %c0_i32_0 : i32, i32
  }
  func.func @transform_9(%arg0: i32) -> (i32, i32) {
    %c0_i32 = arith.constant 0 : i32
    %c0_i32_0 = arith.constant 0 : i32
    %c0_i32_1 = arith.constant 0 : i32
    return %c0_i32, %c0_i32_0 : i32, i32
  }
  func.func @transform_10(%arg0: i32) -> (i32, i32) {
    %c0_i32 = arith.constant 0 : i32
    %c0_i32_0 = arith.constant 0 : i32
    %c0_i32_1 = arith.constant 0 : i32
    return %c0_i32, %c0_i32_0 : i32, i32
  }
  func.func @transform_11(%arg0: i32) -> (i32, i32) {
    %c0_i32 = arith.constant 0 : i32
    %c0_i32_0 = arith.constant 0 : i32
    %c0_i32_1 = arith.constant 0 : i32
    return %c0_i32, %c0_i32_0 : i32, i32
  }
  func.func @transform_12(%arg0: i32) -> (i32, i32) {
    %c0_i32 = arith.constant 0 : i32
    %c0_i32_0 = arith.constant 0 : i32
    %c0_i32_1 = arith.constant 0 : i32
    return %c0_i32, %c0_i32_0 : i32, i32
  }
  func.func @transform_13(%arg0: i32) -> (i32, i32) {
    %c0_i32 = arith.constant 0 : i32
    %c0_i32_0 = arith.constant 0 : i32
    %c0_i32_1 = arith.constant 0 : i32
    return %c0_i32, %c0_i32_0 : i32, i32
  }
  func.func @transform_14(%arg0: i32) -> (i32, i32) {
    %c0_i32 = arith.constant 0 : i32
    %c0_i32_0 = arith.constant 0 : i32
    %c0_i32_1 = arith.constant 0 : i32
    return %c0_i32, %c0_i32_0 : i32, i32
  }
  func.func @transform_15(%arg0: i32) -> (i32, i32) {
    %c0_i32 = arith.constant 0 : i32
    %c0_i32_0 = arith.constant 0 : i32
    %c0_i32_1 = arith.constant 0 : i32
    return %c0_i32, %c0_i32_0 : i32, i32
  }
  func.func @transform_16(%arg0: i32) -> (i32, i32) {
    %c0_i32 = arith.constant 0 : i32
    %c0_i32_0 = arith.constant 0 : i32
    %c0_i32_1 = arith.constant 0 : i32
    return %c0_i32, %c0_i32_0 : i32, i32
  }
  func.func @transform_17(%arg0: i32) -> (i32, i32, i32) {
    %c0_i32 = arith.constant 0 : i32
    %c0_i32_0 = arith.constant 0 : i32
    %c0_i32_1 = arith.constant 0 : i32
    return %arg0, %c0_i32, %c0_i32_0 : i32, i32, i32
  }
}

</mosaic_0001>

<llo_original>
// kernel: tpu_custom_call.1
$region0: #{tpu_custom_call.1}
  #allocation0 [shape = 'u32[]', space=smem, size = 0x4, offset = 0x4, fixed_abs, tag = 'smem constant byte address 0x4 - core index']
  #allocation1 [shape = 'u32[72,128]{1,0:T(1,128)}', space=vmem, size = 0x9000, scoped, tag = 'internal scratch']
  %s0 = inlined_call_operand.vmem [shape: f32[2,8,32], index: 0, kind: input, shape index: {}]
  %s1 = inlined_call_operand.vmem [shape: f32[4,32,8], index: 1, kind: input, shape index: {}]
  %s2 = inlined_call_operand.vmem [shape: f32[4,1,8], index: 2, kind: input, shape index: {}]
  %s3 = inlined_call_operand.vmem [shape: f32[4,32,8], index: 3, kind: input, shape index: {}]
  %s4 = inlined_call_operand.vmem [shape: f32[4,1,8], index: 4, kind: input, shape index: {}]
  %s5 = inlined_call_operand.vmem [shape: f32[4,32,8], index: 5, kind: input, shape index: {}]
  %s6 = inlined_call_operand.vmem [shape: f32[4,1,8], index: 6, kind: input, shape index: {}]
  %s7 = inlined_call_operand.vmem [shape: f32[4,8,32], index: 7, kind: input, shape index: {}]
  %s8 = inlined_call_operand.vmem [shape: f32[1,32], index: 8, kind: input, shape index: {}]
  %s9 = inlined_call_operand.vmem [shape: f32[1,32], index: 9, kind: input, shape index: {}]
  %s10 = inlined_call_operand.vmem [shape: f32[1,32], index: 10, kind: input, shape index: {}]
  %s11 = inlined_call_operand.vmem [shape: f32[32,64], index: 11, kind: input, shape index: {}]
  %s12 = inlined_call_operand.vmem [shape: f32[1,64], index: 12, kind: input, shape index: {}]
  %s13 = inlined_call_operand.vmem [shape: f32[64,32], index: 13, kind: input, shape index: {}]
  %s14 = inlined_call_operand.vmem [shape: f32[1,32], index: 14, kind: input, shape index: {}]
  %s15 = inlined_call_operand.vmem [shape: f32[1,32], index: 15, kind: input, shape index: {}]
  %s16 = inlined_call_operand.vmem [shape: f32[1,32], index: 16, kind: input, shape index: {}]
  %s17 = inlined_call_operand.hbm [shape: f32[2,8,32], index: 17, kind: output, shape index: {}]
  %s18 = sld [smem:[#allocation0]]
  $region78: #{tpu_custom_call.1} parent=0
    _
  %s20 = ssub.s32 1, %s18
  %s21 = scalar_select 0, %s20, %s18
  $region1: #{tpu_custom_call.1} parent=0
    #allocation2 [shape = 'u8[8192]{0}', space=vmem, size = 0x2000, scoped, tag = 'output window, operand 0, single buffered']
    #allocation3 [shape = 's32[1]{0}', space=sflag, size = 0x4, scoped, tag = 'scoped memory for tpu_custom_call.1']
    %22 = vsyncpa [#allocation3], 0
    // Predicated region
    $region2: #{tpu_custom_call.1} parent=1 // pred_check
      _
    $region3: #{tpu_custom_call.1} parent=1 // pred_check_branch
      %24 = sbr.rel (0) target = $region5
    $region4: #{tpu_custom_call.1} parent=1 // pred_region
      _
    $region5: #{tpu_custom_call.1} parent=1 // pred_fallthru
      _
    // Predicated region
    $region6: #{tpu_custom_call.1} parent=1 // pred_check
      _
    $region7: #{tpu_custom_call.1} parent=1 // pred_check_branch
      %26 = sbr.rel (0) target = $region9
    $region8: #{tpu_custom_call.1} parent=1 // pred_region
      _
    $region9: #{tpu_custom_call.1} parent=1 // pred_fallthru
      _
    // Predicated region
    $region10: #{tpu_custom_call.1} parent=1 // pred_check
      _
    $region11: #{tpu_custom_call.1} parent=1 // pred_check_branch
      %28 = sbr.rel (0) target = $region13
    $region12: #{tpu_custom_call.1} parent=1 // pred_region
      _
    $region13: #{tpu_custom_call.1} parent=1 // pred_fallthru
      _
    // Predicated region
    $region14: #{tpu_custom_call.1} parent=1 // pred_check
      _
    $region15: #{tpu_custom_call.1} parent=1 // pred_check_branch
      %30 = sbr.rel (0) target = $region17
    $region16: #{tpu_custom_call.1} parent=1 // pred_region
      _
    $region17: #{tpu_custom_call.1} parent=1 // pred_fallthru
      _
    // Predicated region
    $region18: #{tpu_custom_call.1} parent=1 // pred_check
      _
    $region19: #{tpu_custom_call.1} parent=1 // pred_check_branch
      %32 = sbr.rel (0) target = $region21
    $region20: #{tpu_custom_call.1} parent=1 // pred_region
      _
    $region21: #{tpu_custom_call.1} parent=1 // pred_fallthru
      _
    // Predicated region
    $region22: #{tpu_custom_call.1} parent=1 // pred_check
      _
    $region23: #{tpu_custom_call.1} parent=1 // pred_check_branch
      %34 = sbr.rel (0) target = $region25
    $region24: #{tpu_custom_call.1} parent=1 // pred_region
      _
    $region25: #{tpu_custom_call.1} parent=1 // pred_fallthru
      _
    // Predicated region
    $region26: #{tpu_custom_call.1} parent=1 // pred_check
      _
    $region27: #{tpu_custom_call.1} parent=1 // pred_check_branch
      %36 = sbr.rel (0) target = $region29
    $region28: #{tpu_custom_call.1} parent=1 // pred_region
      _
    $region29: #{tpu_custom_call.1} parent=1 // pred_fallthru
      _
    // Predicated region
    $region30: #{tpu_custom_call.1} parent=1 // pred_check
      _
    $region31: #{tpu_custom_call.1} parent=1 // pred_check_branch
      %38 = sbr.rel (0) target = $region33
    $region32: #{tpu_custom_call.1} parent=1 // pred_region
      _
    $region33: #{tpu_custom_call.1} parent=1 // pred_fallthru
      _
    // Predicated region
    $region34: #{tpu_custom_call.1} parent=1 // pred_check
      _
    $region35: #{tpu_custom_call.1} parent=1 // pred_check_branch
      %40 = sbr.rel (0) target = $region37
    $region36: #{tpu_custom_call.1} parent=1 // pred_region
      _
    $region37: #{tpu_custom_call.1} parent=1 // pred_fallthru
      _
    // Predicated region
    $region38: #{tpu_custom_call.1} parent=1 // pred_check
      _
    $region39: #{tpu_custom_call.1} parent=1 // pred_check_branch
      %42 = sbr.rel (0) target = $region41
    $region40: #{tpu_custom_call.1} parent=1 // pred_region
      _
    $region41: #{tpu_custom_call.1} parent=1 // pred_fallthru
      _
    // Predicated region
    $region42: #{tpu_custom_call.1} parent=1 // pred_check
      _
    $region43: #{tpu_custom_call.1} parent=1 // pred_check_branch
      %44 = sbr.rel (0) target = $region45
    $region44: #{tpu_custom_call.1} parent=1 // pred_region
      _
    $region45: #{tpu_custom_call.1} parent=1 // pred_fallthru
      _
    // Predicated region
    $region46: #{tpu_custom_call.1} parent=1 // pred_check
      _
    $region47: #{tpu_custom_call.1} parent=1 // pred_check_branch
      %46 = sbr.rel (0) target = $region49
    $region48: #{tpu_custom_call.1} parent=1 // pred_region
      _
    $region49: #{tpu_custom_call.1} parent=1 // pred_fallthru
      _
    // Predicated region
    $region50: #{tpu_custom_call.1} parent=1 // pred_check
      _
    $region51: #{tpu_custom_call.1} parent=1 // pred_check_branch
      %48 = sbr.rel (0) target = $region53
    $region52: #{tpu_custom_call.1} parent=1 // pred_region
      _
    $region53: #{tpu_custom_call.1} parent=1 // pred_fallthru
      _
    // Predicated region
    $region54: #{tpu_custom_call.1} parent=1 // pred_check
      _
    $region55: #{tpu_custom_call.1} parent=1 // pred_check_branch
      %50 = sbr.rel (0) target = $region57
    $region56: #{tpu_custom_call.1} parent=1 // pred_region
      _
    $region57: #{tpu_custom_call.1} parent=1 // pred_fallthru
      _
    // Predicated region
    $region58: #{tpu_custom_call.1} parent=1 // pred_check
      _
    $region59: #{tpu_custom_call.1} parent=1 // pred_check_branch
      %52 = sbr.rel (0) target = $region61
    $region60: #{tpu_custom_call.1} parent=1 // pred_region
      _
    $region61: #{tpu_custom_call.1} parent=1 // pred_fallthru
      _
    // Predicated region
    $region62: #{tpu_custom_call.1} parent=1 // pred_check
      _
    $region63: #{tpu_custom_call.1} parent=1 // pred_check_branch
      %54 = sbr.rel (0) target = $region65
    $region64: #{tpu_custom_call.1} parent=1 // pred_region
      _
    $region65: #{tpu_custom_call.1} parent=1 // pred_fallthru
      _
    // Predicated region
    $region66: #{tpu_custom_call.1} parent=1 // pred_check
      _
    $region67: #{tpu_custom_call.1} parent=1 // pred_check_branch
      %56 = sbr.rel (0) target = $region69
    $region68: #{tpu_custom_call.1} parent=1 // pred_region
      _
    $region69: #{tpu_custom_call.1} parent=1 // pred_fallthru
      _
    %v57 = vld [vmem:[%s0] sm:$0xff]
    %v58 = vld [vmem:[%s0 + $0x8] sm:$0xff]
    %v59 = vld [vmem:[%s1] sm:$0xff]
    %v60 = vld [vmem:[%s1 + $0x8] sm:$0xff]
    %v61 = vld [vmem:[%s1 + $0x10] sm:$0xff]
    %v62 = vld [vmem:[%s1 + $0x18] sm:$0xff]
    %v63 = vld [vmem:[%s2] sm:$0x1]
    %v65 = vperm.slane %v63, 0
    %vm67 = vcmask 261120
    %v69 = vsel %vm67, %v57, 0
    %v72 = vsel %vm67, %v58, 0
    %74 = vmatpush.msra.mxu0 0.0
    %75 = vmatpush.msra.mxu0 0.0
    %76 = vmatpush.msra.mxu0 0.0
    %77 = vmatpush.msra.mxu0 0.0
    %78 = vmatpush.msra.mxu0 0.0
    %79 = vmatpush.msra.mxu0 0.0
    %80 = vmatpush.msra.mxu0 0.0
    %81 = vmatpush.msra.mxu0 0.0
    %82 = vmatpush.msra.mxu0 0.0
    %83 = vmatpush.msra.mxu0 0.0
    %84 = vmatpush.msra.mxu0 0.0
    %85 = vmatpush.msra.mxu0 0.0
    %86 = vmatpush.msra.mxu0 %v62
    %87 = vmatpush.msra.mxu0 %v61
    %88 = vmatpush.msra.mxu0 %v60
    %89 = vmatpush.msra.mxu0 %v59
    %90 = vmatmul.f32.gmra.mxu0 %v69
    %v91 = vpop.f32.mrf.mxu0
    %v92 = vadd.f32 %v65, %v91
    %93 = vmatmul.f32.gmra.mxu0 %v72
    %v94 = vpop.f32.mrf.mxu0
    %v95 = vadd.f32 %v65, %v94
    %96 = vdwg.mxu0
    %v97 = vld [vmem:[%s3] sm:$0xff]
    %v98 = vld [vmem:[%s3 + $0x8] sm:$0xff]
    %v99 = vld [vmem:[%s3 + $0x10] sm:$0xff]
    %v100 = vld [vmem:[%s3 + $0x18] sm:$0xff]
    %v101 = vld [vmem:[%s4] sm:$0x1]
    %v103 = vperm.slane %v101, 0
    %105 = vmatpush.msra.mxu0 0.0
    %106 = vmatpush.msra.mxu0 0.0
    %107 = vmatpush.msra.mxu0 0.0
    %108 = vmatpush.msra.mxu0 0.0
    %109 = vmatpush.msra.mxu0 0.0
    %110 = vmatpush.msra.mxu0 0.0
    %111 = vmatpush.msra.mxu0 0.0
    %112 = vmatpush.msra.mxu0 0.0
    %113 = vmatpush.msra.mxu0 0.0
    %114 = vmatpush.msra.mxu0 0.0
    %115 = vmatpush.msra.mxu0 0.0
    %116 = vmatpush.msra.mxu0 0.0
    %117 = vmatpush.msra.mxu0 %v100
    %118 = vmatpush.msra.mxu0 %v99
    %119 = vmatpush.msra.mxu0 %v98
    %120 = vmatpush.msra.mxu0 %v97
    %121 = vmatmul.f32.gmra.mxu0 %v69
    %v122 = vpop.f32.mrf.mxu0
    %v123 = vadd.f32 %v103, %v122
    %124 = vmatmul.f32.gmra.mxu0 %v72
    %v125 = vpop.f32.mrf.mxu0
    %v126 = vadd.f32 %v103, %v125
    %127 = vdwg.mxu0
    %v128 = vld [vmem:[%s5] sm:$0xff]
    %v129 = vld [vmem:[%s5 + $0x8] sm:$0xff]
    %v130 = vld [vmem:[%s5 + $0x10] sm:$0xff]
    %v131 = vld [vmem:[%s5 + $0x18] sm:$0xff]
    %v132 = vld [vmem:[%s6] sm:$0x1]
    %v134 = vperm.slane %v132, 0
    %136 = vmatpush.msra.mxu0 0.0
    %137 = vmatpush.msra.mxu0 0.0
    %138 = vmatpush.msra.mxu0 0.0
    %139 = vmatpush.msra.mxu0 0.0
    %140 = vmatpush.msra.mxu0 0.0
    %141 = vmatpush.msra.mxu0 0.0
    %142 = vmatpush.msra.mxu0 0.0
    %143 = vmatpush.msra.mxu0 0.0
    %144 = vmatpush.msra.mxu0 0.0
    %145 = vmatpush.msra.mxu0 0.0
    %146 = vmatpush.msra.mxu0 0.0
    %147 = vmatpush.msra.mxu0 0.0
    %148 = vmatpush.msra.mxu0 %v131
    %149 = vmatpush.msra.mxu0 %v130
    %150 = vmatpush.msra.mxu0 %v129
    %151 = vmatpush.msra.mxu0 %v128
    %152 = vmatmul.f32.gmra.mxu0 %v69
    %v153 = vpop.f32.mrf.mxu0
    %v154 = vadd.f32 %v134, %v153
    %155 = vmatmul.f32.gmra.mxu0 %v72
    %v156 = vpop.f32.mrf.mxu0
    %v157 = vadd.f32 %v134, %v156
    %158 = vdwg.mxu0
    %vm159 = vcmask 64512
    %v161 = vsel %vm159, %v92, 0
    %v164 = vsel %vm159, %v123, 0
    %166 = vmatpush.xpose.msra.mxu0 0.0
    %167 = vmatpush.xpose.msra.mxu0 0.0
    %168 = vmatpush.xpose.msra.mxu0 0.0
    %169 = vmatpush.xpose.msra.mxu0 0.0
    %170 = vmatpush.xpose.msra.mxu0 0.0
    %171 = vmatpush.xpose.msra.mxu0 0.0
    %172 = vmatpush.xpose.msra.mxu0 0.0
    %173 = vmatpush.xpose.msra.mxu0 0.0
    %174 = vmatpush.xpose.msra.mxu0 0.0
    %175 = vmatpush.xpose.msra.mxu0 0.0
    %176 = vmatpush.xpose.msra.mxu0 0.0
    %177 = vmatpush.xpose.msra.mxu0 0.0
    %178 = vmatpush.xpose.msra.mxu0 0.0
    %179 = vmatpush.xpose.msra.mxu0 0.0
    %180 = vmatpush.xpose.msra.mxu0 0.0
    %181 = vmatpush.xpose.msra.mxu0 %v164
    %182 = vmatmul.f32.gmra.mxu0 %v161
    %v183 = vpop.f32.mrf.mxu0
    %v184 = vadd.f32 0.0, %v183
    %185 = vdwg.mxu0
    %v187 = vsel %vm159, %v95, 0
    %v190 = vsel %vm159, %v126, 0
    %192 = vmatpush.xpose.msra.mxu0 0.0
    %193 = vmatpush.xpose.msra.mxu0 0.0
    %194 = vmatpush.xpose.msra.mxu0 0.0
    %195 = vmatpush.xpose.msra.mxu0 0.0
    %196 = vmatpush.xpose.msra.mxu0 0.0
    %197 = vmatpush.xpose.msra.mxu0 0.0
    %198 = vmatpush.xpose.msra.mxu0 0.0
    %199 = vmatpush.xpose.msra.mxu0 0.0
    %200 = vmatpush.xpose.msra.mxu0 0.0
    %201 = vmatpush.xpose.msra.mxu0 0.0
    %202 = vmatpush.xpose.msra.mxu0 0.0
    %203 = vmatpush.xpose.msra.mxu0 0.0
    %204 = vmatpush.xpose.msra.mxu0 0.0
    %205 = vmatpush.xpose.msra.mxu0 0.0
    %206 = vmatpush.xpose.msra.mxu0 0.0
    %207 = vmatpush.xpose.msra.mxu0 %v190
    %208 = vmatmul.f32.gmra.mxu0 %v187
    %v209 = vpop.f32.mrf.mxu0
    %v210 = vadd.f32 0.0, %v209
    %211 = vdwg.mxu0
    %v212 = vmul.f32 %v184, 0.35355338
    %v213 = vmul.f32 %v210, 0.35355338
    %v214 = vsel %vm159, %v212, -inf
    %215 = vmax.xlane.f32.xlu0 %v214
    %v216 = vpop.xlane.xlu0 %215
    %v217 = vsel %vm159, %v213, -inf
    %218 = vmax.xlane.f32.xlu0 %v217
    %v219 = vpop.xlane.xlu0 %218
    %v220 = vsub.f32 %v212, %v216
    %v221 = vsub.f32 %v213, %v219
    %v222 = vmul.f32 %v220, 1.442695
    %v223 = vpow.pop %v222
    %v224 = vmul.f32 %v221, 1.442695
    %v225 = vpow.pop %v224
    %v226 = vsel %vm159, %v223, 0.0
    %227 = vadd.xlane.f32.xlu0 %v226
    %v228 = vpop.xlane.xlu0 %227
    %v229 = vsel %vm159, %v225, 0.0
    %230 = vadd.xlane.f32.xlu0 %v229
    %v231 = vpop.xlane.xlu0 %230
    %v232 = vrcp.pop %v228
    %v233 = vmul.f32 %v228, %v232
    %v234 = vsub.f32 1.0, %v233
    %v235 = vmul.f32 %v232, %v234
    %v236 = vadd.f32 %v232, %v235
    %vm237 = vweird.f32 %v228
    %vm238 = vweird.f32 %v232
    %vm239 = vmor %vm237, %vm238
    %v240 = vsel %vm239, %v232, %v236
    %v241 = vand.u32 2147483647, %v228
    %vm242 = vcmp.eq.f32.partialorder %v241, 8.507059e+37
    %v243 = vand.u32 %v228, 2147483648
    %v244 = vor.u32 1.1754944e-38, %v243
    %v245 = vsel %vm242, %v244, %v240
    %v246 = vrcp.pop %v231
    %v247 = vmul.f32 %v231, %v246
    %v248 = vsub.f32 1.0, %v247
    %v249 = vmul.f32 %v246, %v248
    %v250 = vadd.f32 %v246, %v249
    %vm251 = vweird.f32 %v231
    %vm252 = vweird.f32 %v246
    %vm253 = vmor %vm251, %vm252
    %v254 = vsel %vm253, %v246, %v250
    %v255 = vand.u32 2147483647, %v231
    %vm256 = vcmp.eq.f32.partialorder %v255, 8.507059e+37
    %v257 = vand.u32 %v231, 2147483648
    %v258 = vor.u32 1.1754944e-38, %v257
    %v259 = vsel %vm256, %v258, %v254
    %v260 = vmul.f32 %v223, %v245
    %v261 = vmul.f32 %v225, %v259
    %v263 = vsel %vm159, %v260, 0
    %265 = vmatpush.msra.mxu0 0.0
    %266 = vmatpush.msra.mxu0 0.0
    %267 = vmatpush.msra.mxu0 0.0
    %268 = vmatpush.msra.mxu0 0.0
    %269 = vmatpush.msra.mxu0 0.0
    %270 = vmatpush.msra.mxu0 0.0
    %271 = vmatpush.msra.mxu0 0.0
    %272 = vmatpush.msra.mxu0 0.0
    %273 = vmatpush.msra.mxu0 0.0
    %274 = vmatpush.msra.mxu0 0.0
    %275 = vmatpush.msra.mxu0 0.0
    %276 = vmatpush.msra.mxu0 0.0
    %277 = vmatpush.msra.mxu0 0.0
    %278 = vmatpush.msra.mxu0 0.0
    %279 = vmatpush.msra.mxu0 0.0
    %280 = vmatpush.msra.mxu0 %v154
    %281 = vmatmul.f32.gmra.mxu0 %v263
    %v282 = vpop.f32.mrf.mxu0
    %v283 = vadd.f32 0.0, %v282
    %284 = vdwg.mxu0
    %v286 = vsel %vm159, %v261, 0
    %288 = vmatpush.msra.mxu0 0.0
    %289 = vmatpush.msra.mxu0 0.0
    %290 = vmatpush.msra.mxu0 0.0
    %291 = vmatpush.msra.mxu0 0.0
    %292 = vmatpush.msra.mxu0 0.0
    %293 = vmatpush.msra.mxu0 0.0
    %294 = vmatpush.msra.mxu0 0.0
    %295 = vmatpush.msra.mxu0 0.0
    %296 = vmatpush.msra.mxu0 0.0
    %297 = vmatpush.msra.mxu0 0.0
    %298 = vmatpush.msra.mxu0 0.0
    %299 = vmatpush.msra.mxu0 0.0
    %300 = vmatpush.msra.mxu0 0.0
    %301 = vmatpush.msra.mxu0 0.0
    %302 = vmatpush.msra.mxu0 0.0
    %303 = vmatpush.msra.mxu0 %v157
    %304 = vmatmul.f32.gmra.mxu0 %v286
    %v305 = vpop.f32.mrf.mxu0
    %v306 = vadd.f32 0.0, %v305
    %307 = vdwg.mxu0
    %v308 = vld [vmem:[%s7] sm:$0xff]
    %s309 = scalar_lea.vmem %s1, 32
    %v310 = vld [vmem:[%s309] sm:$0xff]
    %v311 = vld [vmem:[%s309 + $0x8] sm:$0xff]
    %v312 = vld [vmem:[%s309 + $0x10] sm:$0xff]
    %v313 = vld [vmem:[%s309 + $0x18] sm:$0xff]
    %s314 = scalar_lea.vmem %s2, 1
    %v315 = vld [vmem:[%s314] sm:$0x1]
    %v317 = vperm.slane %v315, 0
    %319 = vmatpush.msra.mxu0 0.0
    %320 = vmatpush.msra.mxu0 0.0
    %321 = vmatpush.msra.mxu0 0.0
    %322 = vmatpush.msra.mxu0 0.0
    %323 = vmatpush.msra.mxu0 0.0
    %324 = vmatpush.msra.mxu0 0.0
    %325 = vmatpush.msra.mxu0 0.0
    %326 = vmatpush.msra.mxu0 0.0
    %327 = vmatpush.msra.mxu0 0.0
    %328 = vmatpush.msra.mxu0 0.0
    %329 = vmatpush.msra.mxu0 0.0
    %330 = vmatpush.msra.mxu0 0.0
    %331 = vmatpush.msra.mxu0 %v313
    %332 = vmatpush.msra.mxu0 %v312
    %333 = vmatpush.msra.mxu0 %v311
    %334 = vmatpush.msra.mxu0 %v310
    %335 = vmatmul.f32.gmra.mxu0 %v69
    %v336 = vpop.f32.mrf.mxu0
    %v337 = vadd.f32 %v317, %v336
    %338 = vmatmul.f32.gmra.mxu0 %v72
    %v339 = vpop.f32.mrf.mxu0
    %v340 = vadd.f32 %v317, %v339
    %341 = vdwg.mxu0
    %s342 = scalar_lea.vmem %s3, 32
    %v343 = vld [vmem:[%s342] sm:$0xff]
    %v344 = vld [vmem:[%s342 + $0x8] sm:$0xff]
    %v345 = vld [vmem:[%s342 + $0x10] sm:$0xff]
    %v346 = vld [vmem:[%s342 + $0x18] sm:$0xff]
    %s347 = scalar_lea.vmem %s4, 1
    %v348 = vld [vmem:[%s347] sm:$0x1]
    %v350 = vperm.slane %v348, 0
    %352 = vmatpush.msra.mxu0 0.0
    %353 = vmatpush.msra.mxu0 0.0
    %354 = vmatpush.msra.mxu0 0.0
    %355 = vmatpush.msra.mxu0 0.0
    %356 = vmatpush.msra.mxu0 0.0
    %357 = vmatpush.msra.mxu0 0.0
    %358 = vmatpush.msra.mxu0 0.0
    %359 = vmatpush.msra.mxu0 0.0
    %360 = vmatpush.msra.mxu0 0.0
    %361 = vmatpush.msra.mxu0 0.0
    %362 = vmatpush.msra.mxu0 0.0
    %363 = vmatpush.msra.mxu0 0.0
    %364 = vmatpush.msra.mxu0 %v346
    %365 = vmatpush.msra.mxu0 %v345
    %366 = vmatpush.msra.mxu0 %v344
    %367 = vmatpush.msra.mxu0 %v343
    %368 = vmatmul.f32.gmra.mxu0 %v69
    %v369 = vpop.f32.mrf.mxu0
    %v370 = vadd.f32 %v350, %v369
    %371 = vmatmul.f32.gmra.mxu0 %v72
    %v372 = vpop.f32.mrf.mxu0
    %v373 = vadd.f32 %v350, %v372
    %374 = vdwg.mxu0
    %s375 = scalar_lea.vmem %s5, 32
    %v376 = vld [vmem:[%s375] sm:$0xff]
    %v377 = vld [vmem:[%s375 + $0x8] sm:$0xff]
    %v378 = vld [vmem:[%s375 + $0x10] sm:$0xff]
    %v379 = vld [vmem:[%s375 + $0x18] sm:$0xff]
    %s380 = scalar_lea.vmem %s6, 1
    %v381 = vld [vmem:[%s380] sm:$0x1]
    %v383 = vperm.slane %v381, 0
    %385 = vmatpush.msra.mxu0 0.0
    %386 = vmatpush.msra.mxu0 0.0
    %387 = vmatpush.msra.mxu0 0.0
    %388 = vmatpush.msra.mxu0 0.0
    %389 = vmatpush.msra.mxu0 0.0
    %390 = vmatpush.msra.mxu0 0.0
    %391 = vmatpush.msra.mxu0 0.0
    %392 = vmatpush.msra.mxu0 0.0
    %393 = vmatpush.msra.mxu0 0.0
    %394 = vmatpush.msra.mxu0 0.0
    %395 = vmatpush.msra.mxu0 0.0
    %396 = vmatpush.msra.mxu0 0.0
    %397 = vmatpush.msra.mxu0 %v379
    %398 = vmatpush.msra.mxu0 %v378
    %399 = vmatpush.msra.mxu0 %v377
    %400 = vmatpush.msra.mxu0 %v376
    %401 = vmatmul.f32.gmra.mxu0 %v69
    %v402 = vpop.f32.mrf.mxu0
    %v403 = vadd.f32 %v383, %v402
    %404 = vmatmul.f32.gmra.mxu0 %v72
    %v405 = vpop.f32.mrf.mxu0
    %v406 = vadd.f32 %v383, %v405
    %407 = vdwg.mxu0
    %v409 = vsel %vm159, %v337, 0
    %v412 = vsel %vm159, %v370, 0
    %414 = vmatpush.xpose.msra.mxu0 0.0
    %415 = vmatpush.xpose.msra.mxu0 0.0
    %416 = vmatpush.xpose.msra.mxu0 0.0
    %417 = vmatpush.xpose.msra.mxu0 0.0
    %418 = vmatpush.xpose.msra.mxu0 0.0
    %419 = vmatpush.xpose.msra.mxu0 0.0
    %420 = vmatpush.xpose.msra.mxu0 0.0
    %421 = vmatpush.xpose.msra.mxu0 0.0
    %422 = vmatpush.xpose.msra.mxu0 0.0
    %423 = vmatpush.xpose.msra.mxu0 0.0
    %424 = vmatpush.xpose.msra.mxu0 0.0
    %425 = vmatpush.xpose.msra.mxu0 0.0
    %426 = vmatpush.xpose.msra.mxu0 0.0
    %427 = vmatpush.xpose.msra.mxu0 0.0
    %428 = vmatpush.xpose.msra.mxu0 0.0
    %429 = vmatpush.xpose.msra.mxu0 %v412
    %430 = vmatmul.f32.gmra.mxu0 %v409
    %v431 = vpop.f32.mrf.mxu0
    %v432 = vadd.f32 0.0, %v431
    %433 = vdwg.mxu0
    %v435 = vsel %vm159, %v340, 0
    %v438 = vsel %vm159, %v373, 0
    %440 = vmatpush.xpose.msra.mxu0 0.0
    %441 = vmatpush.xpose.msra.mxu0 0.0
    %442 = vmatpush.xpose.msra.mxu0 0.0
    %443 = vmatpush.xpose.msra.mxu0 0.0
    %444 = vmatpush.xpose.msra.mxu0 0.0
    %445 = vmatpush.xpose.msra.mxu0 0.0
    %446 = vmatpush.xpose.msra.mxu0 0.0
    %447 = vmatpush.xpose.msra.mxu0 0.0
    %448 = vmatpush.xpose.msra.mxu0 0.0
    %449 = vmatpush.xpose.msra.mxu0 0.0
    %450 = vmatpush.xpose.msra.mxu0 0.0
    %451 = vmatpush.xpose.msra.mxu0 0.0
    %452 = vmatpush.xpose.msra.mxu0 0.0
    %453 = vmatpush.xpose.msra.mxu0 0.0
    %454 = vmatpush.xpose.msra.mxu0 0.0
    %455 = vmatpush.xpose.msra.mxu0 %v438
    %456 = vmatmul.f32.gmra.mxu0 %v435
    %v457 = vpop.f32.mrf.mxu0
    %v458 = vadd.f32 0.0, %v457
    %459 = vdwg.mxu0
    %v460 = vmul.f32 %v432, 0.35355338
    %v461 = vmul.f32 %v458, 0.35355338
    %v462 = vsel %vm159, %v460, -inf
    %463 = vmax.xlane.f32.xlu0 %v462
    %v464 = vpop.xlane.xlu0 %463
    %v465 = vsel %vm159, %v461, -inf
    %466 = vmax.xlane.f32.xlu0 %v465
    %v467 = vpop.xlane.xlu0 %466
    %v468 = vsub.f32 %v460, %v464
    %v469 = vsub.f32 %v461, %v467
    %v470 = vmul.f32 %v468, 1.442695
    %v471 = vpow.pop %v470
    %v472 = vmul.f32 %v469, 1.442695
    %v473 = vpow.pop %v472
    %v474 = vsel %vm159, %v471, 0.0
    %475 = vadd.xlane.f32.xlu0 %v474
    %v476 = vpop.xlane.xlu0 %475
    %v477 = vsel %vm159, %v473, 0.0
    %478 = vadd.xlane.f32.xlu0 %v477
    %v479 = vpop.xlane.xlu0 %478
    %v480 = vrcp.pop %v476
    %v481 = vmul.f32 %v476, %v480
    %v482 = vsub.f32 1.0, %v481
    %v483 = vmul.f32 %v480, %v482
    %v484 = vadd.f32 %v480, %v483
    %vm485 = vweird.f32 %v476
    %vm486 = vweird.f32 %v480
    %vm487 = vmor %vm485, %vm486
    %v488 = vsel %vm487, %v480, %v484
    %v489 = vand.u32 2147483647, %v476
    %vm490 = vcmp.eq.f32.partialorder %v489, 8.507059e+37
    %v491 = vand.u32 %v476, 2147483648
    %v492 = vor.u32 1.1754944e-38, %v491
    %v493 = vsel %vm490, %v492, %v488
    %v494 = vrcp.pop %v479
    %v495 = vmul.f32 %v479, %v494
    %v496 = vsub.f32 1.0, %v495
    %v497 = vmul.f32 %v494, %v496
    %v498 = vadd.f32 %v494, %v497
    %vm499 = vweird.f32 %v479
    %vm500 = vweird.f32 %v494
    %vm501 = vmor %vm499, %vm500
    %v502 = vsel %vm501, %v494, %v498
    %v503 = vand.u32 2147483647, %v479
    %vm504 = vcmp.eq.f32.partialorder %v503, 8.507059e+37
    %v505 = vand.u32 %v479, 2147483648
    %v506 = vor.u32 1.1754944e-38, %v505
    %v507 = vsel %vm504, %v506, %v502
    %v508 = vmul.f32 %v471, %v493
    %v509 = vmul.f32 %v473, %v507
    %v511 = vsel %vm159, %v508, 0
    %513 = vmatpush.msra.mxu0 0.0
    %514 = vmatpush.msra.mxu0 0.0
    %515 = vmatpush.msra.mxu0 0.0
    %516 = vmatpush.msra.mxu0 0.0
    %517 = vmatpush.msra.mxu0 0.0
    %518 = vmatpush.msra.mxu0 0.0
    %519 = vmatpush.msra.mxu0 0.0
    %520 = vmatpush.msra.mxu0 0.0
    %521 = vmatpush.msra.mxu0 0.0
    %522 = vmatpush.msra.mxu0 0.0
    %523 = vmatpush.msra.mxu0 0.0
    %524 = vmatpush.msra.mxu0 0.0
    %525 = vmatpush.msra.mxu0 0.0
    %526 = vmatpush.msra.mxu0 0.0
    %527 = vmatpush.msra.mxu0 0.0
    %528 = vmatpush.msra.mxu0 %v403
    %529 = vmatmul.f32.gmra.mxu0 %v511
    %v530 = vpop.f32.mrf.mxu0
    %v531 = vadd.f32 0.0, %v530
    %532 = vdwg.mxu0
    %v534 = vsel %vm159, %v509, 0
    %536 = vmatpush.msra.mxu0 0.0
    %537 = vmatpush.msra.mxu0 0.0
    %538 = vmatpush.msra.mxu0 0.0
    %539 = vmatpush.msra.mxu0 0.0
    %540 = vmatpush.msra.mxu0 0.0
    %541 = vmatpush.msra.mxu0 0.0
    %542 = vmatpush.msra.mxu0 0.0
    %543 = vmatpush.msra.mxu0 0.0
    %544 = vmatpush.msra.mxu0 0.0
    %545 = vmatpush.msra.mxu0 0.0
    %546 = vmatpush.msra.mxu0 0.0
    %547 = vmatpush.msra.mxu0 0.0
    %548 = vmatpush.msra.mxu0 0.0
    %549 = vmatpush.msra.mxu0 0.0
    %550 = vmatpush.msra.mxu0 0.0
    %551 = vmatpush.msra.mxu0 %v406
    %552 = vmatmul.f32.gmra.mxu0 %v534
    %v553 = vpop.f32.mrf.mxu0
    %v554 = vadd.f32 0.0, %v553
    %555 = vdwg.mxu0
    %s556 = scalar_lea.vmem %s7, 8
    %v557 = vld [vmem:[%s556] sm:$0xff]
    %v559 = vsel %vm159, %v531, 0
    %v562 = vsel %vm159, %v554, 0
    %564 = vmatpush.msra.mxu0 0.0
    %565 = vmatpush.msra.mxu0 0.0
    %566 = vmatpush.msra.mxu0 0.0
    %567 = vmatpush.msra.mxu0 0.0
    %568 = vmatpush.msra.mxu0 0.0
    %569 = vmatpush.msra.mxu0 0.0
    %570 = vmatpush.msra.mxu0 0.0
    %571 = vmatpush.msra.mxu0 0.0
    %572 = vmatpush.msra.mxu0 0.0
    %573 = vmatpush.msra.mxu0 0.0
    %574 = vmatpush.msra.mxu0 0.0
    %575 = vmatpush.msra.mxu0 0.0
    %576 = vmatpush.msra.mxu0 0.0
    %577 = vmatpush.msra.mxu0 0.0
    %578 = vmatpush.msra.mxu0 0.0
    %579 = vmatpush.msra.mxu0 %v557
    %580 = vmatmul.f32.gmra.mxu0 %v559
    %v581 = vpop.f32.mrf.mxu0
    %v582 = vadd.f32 0.0, %v581
    %583 = vmatmul.f32.gmra.mxu0 %v562
    %v584 = vpop.f32.mrf.mxu0
    %v585 = vadd.f32 0.0, %v584
    %586 = vdwg.mxu0
    %v588 = vsel %vm159, %v283, 0
    %v591 = vsel %vm159, %v306, 0
    %593 = vmatpush.msra.mxu0 0.0
    %594 = vmatpush.msra.mxu0 0.0
    %595 = vmatpush.msra.mxu0 0.0
    %596 = vmatpush.msra.mxu0 0.0
    %597 = vmatpush.msra.mxu0 0.0
    %598 = vmatpush.msra.mxu0 0.0
    %599 = vmatpush.msra.mxu0 0.0
    %600 = vmatpush.msra.mxu0 0.0
    %601 = vmatpush.msra.mxu0 0.0
    %602 = vmatpush.msra.mxu0 0.0
    %603 = vmatpush.msra.mxu0 0.0
    %604 = vmatpush.msra.mxu0 0.0
    %605 = vmatpush.msra.mxu0 0.0
    %606 = vmatpush.msra.mxu0 0.0
    %607 = vmatpush.msra.mxu0 0.0
    %608 = vmatpush.msra.mxu0 %v308
    %609 = vmatmul.f32.gmra.mxu0 %v588
    %v610 = vpop.f32.mrf.mxu0
    %v611 = vadd.f32 %v582, %v610
    %612 = vmatmul.f32.gmra.mxu0 %v591
    %v613 = vpop.f32.mrf.mxu0
    %v614 = vadd.f32 %v585, %v613
    %615 = vdwg.mxu0
    %s616 = scalar_lea.vmem %s1, 64
    %v617 = vld [vmem:[%s616] sm:$0xff]
    %v618 = vld [vmem:[%s616 + $0x8] sm:$0xff]
    %v619 = vld [vmem:[%s616 + $0x10] sm:$0xff]
    %v620 = vld [vmem:[%s616 + $0x18] sm:$0xff]
    %s621 = scalar_lea.vmem %s2, 2
    %v622 = vld [vmem:[%s621] sm:$0x1]
    %v624 = vperm.slane %v622, 0
    %626 = vmatpush.msra.mxu0 0.0
    %627 = vmatpush.msra.mxu0 0.0
    %628 = vmatpush.msra.mxu0 0.0
    %629 = vmatpush.msra.mxu0 0.0
    %630 = vmatpush.msra.mxu0 0.0
    %631 = vmatpush.msra.mxu0 0.0
    %632 = vmatpush.msra.mxu0 0.0
    %633 = vmatpush.msra.mxu0 0.0
    %634 = vmatpush.msra.mxu0 0.0
    %635 = vmatpush.msra.mxu0 0.0
    %636 = vmatpush.msra.mxu0 0.0
    %637 = vmatpush.msra.mxu0 0.0
    %638 = vmatpush.msra.mxu0 %v620
    %639 = vmatpush.msra.mxu0 %v619
    %640 = vmatpush.msra.mxu0 %v618
    %641 = vmatpush.msra.mxu0 %v617
    %642 = vmatmul.f32.gmra.mxu0 %v69
    %v643 = vpop.f32.mrf.mxu0
    %v644 = vadd.f32 %v624, %v643
    %645 = vmatmul.f32.gmra.mxu0 %v72
    %v646 = vpop.f32.mrf.mxu0
    %v647 = vadd.f32 %v624, %v646
    %648 = vdwg.mxu0
    %s649 = scalar_lea.vmem %s3, 64
    %v650 = vld [vmem:[%s649] sm:$0xff]
    %v651 = vld [vmem:[%s649 + $0x8] sm:$0xff]
    %v652 = vld [vmem:[%s649 + $0x10] sm:$0xff]
    %v653 = vld [vmem:[%s649 + $0x18] sm:$0xff]
    %s654 = scalar_lea.vmem %s4, 2
    %v655 = vld [vmem:[%s654] sm:$0x1]
    %v657 = vperm.slane %v655, 0
    %659 = vmatpush.msra.mxu0 0.0
    %660 = vmatpush.msra.mxu0 0.0
    %661 = vmatpush.msra.mxu0 0.0
    %662 = vmatpush.msra.mxu0 0.0
    %663 = vmatpush.msra.mxu0 0.0
    %664 = vmatpush.msra.mxu0 0.0
    %665 = vmatpush.msra.mxu0 0.0
    %666 = vmatpush.msra.mxu0 0.0
    %667 = vmatpush.msra.mxu0 0.0
    %668 = vmatpush.msra.mxu0 0.0
    %669 = vmatpush.msra.mxu0 0.0
    %670 = vmatpush.msra.mxu0 0.0
    %671 = vmatpush.msra.mxu0 %v653
    %672 = vmatpush.msra.mxu0 %v652
    %673 = vmatpush.msra.mxu0 %v651
    %674 = vmatpush.msra.mxu0 %v650
    %675 = vmatmul.f32.gmra.mxu0 %v69
    %v676 = vpop.f32.mrf.mxu0
    %v677 = vadd.f32 %v657, %v676
    %678 = vmatmul.f32.gmra.mxu0 %v72
    %v679 = vpop.f32.mrf.mxu0
    %v680 = vadd.f32 %v657, %v679
    %681 = vdwg.mxu0
    %s682 = scalar_lea.vmem %s5, 64
    %v683 = vld [vmem:[%s682] sm:$0xff]
    %v684 = vld [vmem:[%s682 + $0x8] sm:$0xff]
    %v685 = vld [vmem:[%s682 + $0x10] sm:$0xff]
    %v686 = vld [vmem:[%s682 + $0x18] sm:$0xff]
    %s687 = scalar_lea.vmem %s6, 2
    %v688 = vld [vmem:[%s687] sm:$0x1]
    %v690 = vperm.slane %v688, 0
    %692 = vmatpush.msra.mxu0 0.0
    %693 = vmatpush.msra.mxu0 0.0
    %694 = vmatpush.msra.mxu0 0.0
    %695 = vmatpush.msra.mxu0 0.0
    %696 = vmatpush.msra.mxu0 0.0
    %697 = vmatpush.msra.mxu0 0.0
    %698 = vmatpush.msra.mxu0 0.0
    %699 = vmatpush.msra.mxu0 0.0
    %700 = vmatpush.msra.mxu0 0.0
    %701 = vmatpush.msra.mxu0 0.0
    %702 = vmatpush.msra.mxu0 0.0
    %703 = vmatpush.msra.mxu0 0.0
    %704 = vmatpush.msra.mxu0 %v686
    %705 = vmatpush.msra.mxu0 %v685
    %706 = vmatpush.msra.mxu0 %v684
    %707 = vmatpush.msra.mxu0 %v683
    %708 = vmatmul.f32.gmra.mxu0 %v69
    %v709 = vpop.f32.mrf.mxu0
    %v710 = vadd.f32 %v690, %v709
    %711 = vmatmul.f32.gmra.mxu0 %v72
    %v712 = vpop.f32.mrf.mxu0
    %v713 = vadd.f32 %v690, %v712
    %714 = vdwg.mxu0
    %v716 = vsel %vm159, %v644, 0
    %v719 = vsel %vm159, %v677, 0
    %721 = vmatpush.xpose.msra.mxu0 0.0
    %722 = vmatpush.xpose.msra.mxu0 0.0
    %723 = vmatpush.xpose.msra.mxu0 0.0
    %724 = vmatpush.xpose.msra.mxu0 0.0
    %725 = vmatpush.xpose.msra.mxu0 0.0
    %726 = vmatpush.xpose.msra.mxu0 0.0
    %727 = vmatpush.xpose.msra.mxu0 0.0
    %728 = vmatpush.xpose.msra.mxu0 0.0
    %729 = vmatpush.xpose.msra.mxu0 0.0
    %730 = vmatpush.xpose.msra.mxu0 0.0
    %731 = vmatpush.xpose.msra.mxu0 0.0
    %732 = vmatpush.xpose.msra.mxu0 0.0
    %733 = vmatpush.xpose.msra.mxu0 0.0
    %734 = vmatpush.xpose.msra.mxu0 0.0
    %735 = vmatpush.xpose.msra.mxu0 0.0
    %736 = vmatpush.xpose.msra.mxu0 %v719
    %737 = vmatmul.f32.gmra.mxu0 %v716
    %v738 = vpop.f32.mrf.mxu0
    %v739 = vadd.f32 0.0, %v738
    %740 = vdwg.mxu0
    %v742 = vsel %vm159, %v647, 0
    %v745 = vsel %vm159, %v680, 0
    %747 = vmatpush.xpose.msra.mxu0 0.0
    %748 = vmatpush.xpose.msra.mxu0 0.0
    %749 = vmatpush.xpose.msra.mxu0 0.0
    %750 = vmatpush.xpose.msra.mxu0 0.0
    %751 = vmatpush.xpose.msra.mxu0 0.0
    %752 = vmatpush.xpose.msra.mxu0 0.0
    %753 = vmatpush.xpose.msra.mxu0 0.0
    %754 = vmatpush.xpose.msra.mxu0 0.0
    %755 = vmatpush.xpose.msra.mxu0 0.0
    %756 = vmatpush.xpose.msra.mxu0 0.0
    %757 = vmatpush.xpose.msra.mxu0 0.0
    %758 = vmatpush.xpose.msra.mxu0 0.0
    %759 = vmatpush.xpose.msra.mxu0 0.0
    %760 = vmatpush.xpose.msra.mxu0 0.0
    %761 = vmatpush.xpose.msra.mxu0 0.0
    %762 = vmatpush.xpose.msra.mxu0 %v745
    %763 = vmatmul.f32.gmra.mxu0 %v742
    %v764 = vpop.f32.mrf.mxu0
    %v765 = vadd.f32 0.0, %v764
    %766 = vdwg.mxu0
    %v767 = vmul.f32 %v739, 0.35355338
    %v768 = vmul.f32 %v765, 0.35355338
    %v769 = vsel %vm159, %v767, -inf
    %770 = vmax.xlane.f32.xlu0 %v769
    %v771 = vpop.xlane.xlu0 %770
    %v772 = vsel %vm159, %v768, -inf
    %773 = vmax.xlane.f32.xlu0 %v772
    %v774 = vpop.xlane.xlu0 %773
    %v775 = vsub.f32 %v767, %v771
    %v776 = vsub.f32 %v768, %v774
    %v777 = vmul.f32 %v775, 1.442695
    %v778 = vpow.pop %v777
    %v779 = vmul.f32 %v776, 1.442695
    %v780 = vpow.pop %v779
    %v781 = vsel %vm159, %v778, 0.0
    %782 = vadd.xlane.f32.xlu0 %v781
    %v783 = vpop.xlane.xlu0 %782
    %v784 = vsel %vm159, %v780, 0.0
    %785 = vadd.xlane.f32.xlu0 %v784
    %v786 = vpop.xlane.xlu0 %785
    %v787 = vrcp.pop %v783
    %v788 = vmul.f32 %v783, %v787
    %v789 = vsub.f32 1.0, %v788
    %v790 = vmul.f32 %v787, %v789
    %v791 = vadd.f32 %v787, %v790
    %vm792 = vweird.f32 %v783
    %vm793 = vweird.f32 %v787
    %vm794 = vmor %vm792, %vm793
    %v795 = vsel %vm794, %v787, %v791
    %v796 = vand.u32 2147483647, %v783
    %vm797 = vcmp.eq.f32.partialorder %v796, 8.507059e+37
    %v798 = vand.u32 %v783, 2147483648
    %v799 = vor.u32 1.1754944e-38, %v798
    %v800 = vsel %vm797, %v799, %v795
    %v801 = vrcp.pop %v786
    %v802 = vmul.f32 %v786, %v801
    %v803 = vsub.f32 1.0, %v802
    %v804 = vmul.f32 %v801, %v803
    %v805 = vadd.f32 %v801, %v804
    %vm806 = vweird.f32 %v786
    %vm807 = vweird.f32 %v801
    %vm808 = vmor %vm806, %vm807
    %v809 = vsel %vm808, %v801, %v805
    %v810 = vand.u32 2147483647, %v786
    %vm811 = vcmp.eq.f32.partialorder %v810, 8.507059e+37
    %v812 = vand.u32 %v786, 2147483648
    %v813 = vor.u32 1.1754944e-38, %v812
    %v814 = vsel %vm811, %v813, %v809
    %v815 = vmul.f32 %v778, %v800
    %v816 = vmul.f32 %v780, %v814
    %v818 = vsel %vm159, %v815, 0
    %820 = vmatpush.msra.mxu0 0.0
    %821 = vmatpush.msra.mxu0 0.0
    %822 = vmatpush.msra.mxu0 0.0
    %823 = vmatpush.msra.mxu0 0.0
    %824 = vmatpush.msra.mxu0 0.0
    %825 = vmatpush.msra.mxu0 0.0
    %826 = vmatpush.msra.mxu0 0.0
    %827 = vmatpush.msra.mxu0 0.0
    %828 = vmatpush.msra.mxu0 0.0
    %829 = vmatpush.msra.mxu0 0.0
    %830 = vmatpush.msra.mxu0 0.0
    %831 = vmatpush.msra.mxu0 0.0
    %832 = vmatpush.msra.mxu0 0.0
    %833 = vmatpush.msra.mxu0 0.0
    %834 = vmatpush.msra.mxu0 0.0
    %835 = vmatpush.msra.mxu0 %v710
    %836 = vmatmul.f32.gmra.mxu0 %v818
    %v837 = vpop.f32.mrf.mxu0
    %v838 = vadd.f32 0.0, %v837
    %839 = vdwg.mxu0
    %v841 = vsel %vm159, %v816, 0
    %843 = vmatpush.msra.mxu0 0.0
    %844 = vmatpush.msra.mxu0 0.0
    %845 = vmatpush.msra.mxu0 0.0
    %846 = vmatpush.msra.mxu0 0.0
    %847 = vmatpush.msra.mxu0 0.0
    %848 = vmatpush.msra.mxu0 0.0
    %849 = vmatpush.msra.mxu0 0.0
    %850 = vmatpush.msra.mxu0 0.0
    %851 = vmatpush.msra.mxu0 0.0
    %852 = vmatpush.msra.mxu0 0.0
    %853 = vmatpush.msra.mxu0 0.0
    %854 = vmatpush.msra.mxu0 0.0
    %855 = vmatpush.msra.mxu0 0.0
    %856 = vmatpush.msra.mxu0 0.0
    %857 = vmatpush.msra.mxu0 0.0
    %858 = vmatpush.msra.mxu0 %v713
    %859 = vmatmul.f32.gmra.mxu0 %v841
    %v860 = vpop.f32.mrf.mxu0
    %v861 = vadd.f32 0.0, %v860
    %862 = vdwg.mxu0
    %s863 = scalar_lea.vmem %s7, 16
    %v864 = vld [vmem:[%s863] sm:$0xff]
    %v866 = vsel %vm159, %v838, 0
    %v869 = vsel %vm159, %v861, 0
    %871 = vmatpush.msra.mxu0 0.0
    %872 = vmatpush.msra.mxu0 0.0
    %873 = vmatpush.msra.mxu0 0.0
    %874 = vmatpush.msra.mxu0 0.0
    %875 = vmatpush.msra.mxu0 0.0
    %876 = vmatpush.msra.mxu0 0.0
    %877 = vmatpush.msra.mxu0 0.0
    %878 = vmatpush.msra.mxu0 0.0
    %879 = vmatpush.msra.mxu0 0.0
    %880 = vmatpush.msra.mxu0 0.0
    %881 = vmatpush.msra.mxu0 0.0
    %882 = vmatpush.msra.mxu0 0.0
    %883 = vmatpush.msra.mxu0 0.0
    %884 = vmatpush.msra.mxu0 0.0
    %885 = vmatpush.msra.mxu0 0.0
    %886 = vmatpush.msra.mxu0 %v864
    %887 = vmatmul.f32.gmra.mxu0 %v866
    %v888 = vpop.f32.mrf.mxu0
    %v889 = vadd.f32 0.0, %v888
    %890 = vmatmul.f32.gmra.mxu0 %v869
    %v891 = vpop.f32.mrf.mxu0
    %v892 = vadd.f32 0.0, %v891
    %893 = vdwg.mxu0
    %v894 = vadd.f32 %v611, %v889
    %v895 = vadd.f32 %v614, %v892
    %s896 = scalar_lea.vmem %s1, 96
    %v897 = vld [vmem:[%s896] sm:$0xff]
    %v898 = vld [vmem:[%s896 + $0x8] sm:$0xff]
    %v899 = vld [vmem:[%s896 + $0x10] sm:$0xff]
    %v900 = vld [vmem:[%s896 + $0x18] sm:$0xff]
    %s901 = scalar_lea.vmem %s2, 3
    %v902 = vld [vmem:[%s901] sm:$0x1]
    %v904 = vperm.slane %v902, 0
    %906 = vmatpush.msra.mxu0 0.0
    %907 = vmatpush.msra.mxu0 0.0
    %908 = vmatpush.msra.mxu0 0.0
    %909 = vmatpush.msra.mxu0 0.0
    %910 = vmatpush.msra.mxu0 0.0
    %911 = vmatpush.msra.mxu0 0.0
    %912 = vmatpush.msra.mxu0 0.0
    %913 = vmatpush.msra.mxu0 0.0
    %914 = vmatpush.msra.mxu0 0.0
    %915 = vmatpush.msra.mxu0 0.0
    %916 = vmatpush.msra.mxu0 0.0
    %917 = vmatpush.msra.mxu0 0.0
    %918 = vmatpush.msra.mxu0 %v900
    %919 = vmatpush.msra.mxu0 %v899
    %920 = vmatpush.msra.mxu0 %v898
    %921 = vmatpush.msra.mxu0 %v897
    %922 = vmatmul.f32.gmra.mxu0 %v69
    %v923 = vpop.f32.mrf.mxu0
    %v924 = vadd.f32 %v904, %v923
    %925 = vmatmul.f32.gmra.mxu0 %v72
    %v926 = vpop.f32.mrf.mxu0
    %v927 = vadd.f32 %v904, %v926
    %928 = vdwg.mxu0
    %s929 = scalar_lea.vmem %s3, 96
    %v930 = vld [vmem:[%s929] sm:$0xff]
    %v931 = vld [vmem:[%s929 + $0x8] sm:$0xff]
    %v932 = vld [vmem:[%s929 + $0x10] sm:$0xff]
    %v933 = vld [vmem:[%s929 + $0x18] sm:$0xff]
    %s934 = scalar_lea.vmem %s4, 3
    %v935 = vld [vmem:[%s934] sm:$0x1]
    %v937 = vperm.slane %v935, 0
    %939 = vmatpush.msra.mxu0 0.0
    %940 = vmatpush.msra.mxu0 0.0
    %941 = vmatpush.msra.mxu0 0.0
    %942 = vmatpush.msra.mxu0 0.0
    %943 = vmatpush.msra.mxu0 0.0
    %944 = vmatpush.msra.mxu0 0.0
    %945 = vmatpush.msra.mxu0 0.0
    %946 = vmatpush.msra.mxu0 0.0
    %947 = vmatpush.msra.mxu0 0.0
    %948 = vmatpush.msra.mxu0 0.0
    %949 = vmatpush.msra.mxu0 0.0
    %950 = vmatpush.msra.mxu0 0.0
    %951 = vmatpush.msra.mxu0 %v933
    %952 = vmatpush.msra.mxu0 %v932
    %953 = vmatpush.msra.mxu0 %v931
    %954 = vmatpush.msra.mxu0 %v930
    %955 = vmatmul.f32.gmra.mxu0 %v69
    %v956 = vpop.f32.mrf.mxu0
    %v957 = vadd.f32 %v937, %v956
    %958 = vmatmul.f32.gmra.mxu0 %v72
    %v959 = vpop.f32.mrf.mxu0
    %v960 = vadd.f32 %v937, %v959
    %961 = vdwg.mxu0
    %s962 = scalar_lea.vmem %s5, 96
    %v963 = vld [vmem:[%s962] sm:$0xff]
    %v964 = vld [vmem:[%s962 + $0x8] sm:$0xff]
    %v965 = vld [vmem:[%s962 + $0x10] sm:$0xff]
    %v966 = vld [vmem:[%s962 + $0x18] sm:$0xff]
    %s967 = scalar_lea.vmem %s6, 3
    %v968 = vld [vmem:[%s967] sm:$0x1]
    %v970 = vperm.slane %v968, 0
    %972 = vmatpush.msra.mxu0 0.0
    %973 = vmatpush.msra.mxu0 0.0
    %974 = vmatpush.msra.mxu0 0.0
    %975 = vmatpush.msra.mxu0 0.0
    %976 = vmatpush.msra.mxu0 0.0
    %977 = vmatpush.msra.mxu0 0.0
    %978 = vmatpush.msra.mxu0 0.0
    %979 = vmatpush.msra.mxu0 0.0
    %980 = vmatpush.msra.mxu0 0.0
    %981 = vmatpush.msra.mxu0 0.0
    %982 = vmatpush.msra.mxu0 0.0
    %983 = vmatpush.msra.mxu0 0.0
    %984 = vmatpush.msra.mxu0 %v966
    %985 = vmatpush.msra.mxu0 %v965
    %986 = vmatpush.msra.mxu0 %v964
    %987 = vmatpush.msra.mxu0 %v963
    %988 = vmatmul.f32.gmra.mxu0 %v69
    %v989 = vpop.f32.mrf.mxu0
    %v990 = vadd.f32 %v970, %v989
    %991 = vmatmul.f32.gmra.mxu0 %v72
    %v992 = vpop.f32.mrf.mxu0
    %v993 = vadd.f32 %v970, %v992
    %994 = vdwg.mxu0
    %v996 = vsel %vm159, %v924, 0
    %v999 = vsel %vm159, %v957, 0
    %1001 = vmatpush.xpose.msra.mxu0 0.0
    %1002 = vmatpush.xpose.msra.mxu0 0.0
    %1003 = vmatpush.xpose.msra.mxu0 0.0
    %1004 = vmatpush.xpose.msra.mxu0 0.0
    %1005 = vmatpush.xpose.msra.mxu0 0.0
    %1006 = vmatpush.xpose.msra.mxu0 0.0
    %1007 = vmatpush.xpose.msra.mxu0 0.0
    %1008 = vmatpush.xpose.msra.mxu0 0.0
    %1009 = vmatpush.xpose.msra.mxu0 0.0
    %1010 = vmatpush.xpose.msra.mxu0 0.0
    %1011 = vmatpush.xpose.msra.mxu0 0.0
    %1012 = vmatpush.xpose.msra.mxu0 0.0
    %1013 = vmatpush.xpose.msra.mxu0 0.0
    %1014 = vmatpush.xpose.msra.mxu0 0.0
    %1015 = vmatpush.xpose.msra.mxu0 0.0
    %1016 = vmatpush.xpose.msra.mxu0 %v999
    %1017 = vmatmul.f32.gmra.mxu0 %v996
    %v1018 = vpop.f32.mrf.mxu0
    %v1019 = vadd.f32 0.0, %v1018
    %1020 = vdwg.mxu0
    %v1022 = vsel %vm159, %v927, 0
    %v1025 = vsel %vm159, %v960, 0
    %1027 = vmatpush.xpose.msra.mxu0 0.0
    %1028 = vmatpush.xpose.msra.mxu0 0.0
    %1029 = vmatpush.xpose.msra.mxu0 0.0
    %1030 = vmatpush.xpose.msra.mxu0 0.0
    %1031 = vmatpush.xpose.msra.mxu0 0.0
    %1032 = vmatpush.xpose.msra.mxu0 0.0
    %1033 = vmatpush.xpose.msra.mxu0 0.0
    %1034 = vmatpush.xpose.msra.mxu0 0.0
    %1035 = vmatpush.xpose.msra.mxu0 0.0
    %1036 = vmatpush.xpose.msra.mxu0 0.0
    %1037 = vmatpush.xpose.msra.mxu0 0.0
    %1038 = vmatpush.xpose.msra.mxu0 0.0
    %1039 = vmatpush.xpose.msra.mxu0 0.0
    %1040 = vmatpush.xpose.msra.mxu0 0.0
    %1041 = vmatpush.xpose.msra.mxu0 0.0
    %1042 = vmatpush.xpose.msra.mxu0 %v1025
    %1043 = vmatmul.f32.gmra.mxu0 %v1022
    %v1044 = vpop.f32.mrf.mxu0
    %v1045 = vadd.f32 0.0, %v1044
    %1046 = vdwg.mxu0
    %v1047 = vmul.f32 %v1019, 0.35355338
    %v1048 = vmul.f32 %v1045, 0.35355338
    %v1049 = vsel %vm159, %v1047, -inf
    %1050 = vmax.xlane.f32.xlu0 %v1049
    %v1051 = vpop.xlane.xlu0 %1050
    %v1052 = vsel %vm159, %v1048, -inf
    %1053 = vmax.xlane.f32.xlu0 %v1052
    %v1054 = vpop.xlane.xlu0 %1053
    %v1055 = vsub.f32 %v1047, %v1051
    %v1056 = vsub.f32 %v1048, %v1054
    %v1057 = vmul.f32 %v1055, 1.442695
    %v1058 = vpow.pop %v1057
    %v1059 = vmul.f32 %v1056, 1.442695
    %v1060 = vpow.pop %v1059
    %v1061 = vsel %vm159, %v1058, 0.0
    %1062 = vadd.xlane.f32.xlu0 %v1061
    %v1063 = vpop.xlane.xlu0 %1062
    %v1064 = vsel %vm159, %v1060, 0.0
    %1065 = vadd.xlane.f32.xlu0 %v1064
    %v1066 = vpop.xlane.xlu0 %1065
    %v1067 = vrcp.pop %v1063
    %v1068 = vmul.f32 %v1063, %v1067
    %v1069 = vsub.f32 1.0, %v1068
    %v1070 = vmul.f32 %v1067, %v1069
    %v1071 = vadd.f32 %v1067, %v1070
    %vm1072 = vweird.f32 %v1063
    %vm1073 = vweird.f32 %v1067
    %vm1074 = vmor %vm1072, %vm1073
    %v1075 = vsel %vm1074, %v1067, %v1071
    %v1076 = vand.u32 2147483647, %v1063
    %vm1077 = vcmp.eq.f32.partialorder %v1076, 8.507059e+37
    %v1078 = vand.u32 %v1063, 2147483648
    %v1079 = vor.u32 1.1754944e-38, %v1078
    %v1080 = vsel %vm1077, %v1079, %v1075
    %v1081 = vrcp.pop %v1066
    %v1082 = vmul.f32 %v1066, %v1081
    %v1083 = vsub.f32 1.0, %v1082
    %v1084 = vmul.f32 %v1081, %v1083
    %v1085 = vadd.f32 %v1081, %v1084
    %vm1086 = vweird.f32 %v1066
    %vm1087 = vweird.f32 %v1081
    %vm1088 = vmor %vm1086, %vm1087
    %v1089 = vsel %vm1088, %v1081, %v1085
    %v1090 = vand.u32 2147483647, %v1066
    %vm1091 = vcmp.eq.f32.partialorder %v1090, 8.507059e+37
    %v1092 = vand.u32 %v1066, 2147483648
    %v1093 = vor.u32 1.1754944e-38, %v1092
    %v1094 = vsel %vm1091, %v1093, %v1089
    %v1095 = vmul.f32 %v1058, %v1080
    %v1096 = vmul.f32 %v1060, %v1094
    %v1098 = vsel %vm159, %v1095, 0
    %1100 = vmatpush.msra.mxu0 0.0
    %1101 = vmatpush.msra.mxu0 0.0
    %1102 = vmatpush.msra.mxu0 0.0
    %1103 = vmatpush.msra.mxu0 0.0
    %1104 = vmatpush.msra.mxu0 0.0
    %1105 = vmatpush.msra.mxu0 0.0
    %1106 = vmatpush.msra.mxu0 0.0
    %1107 = vmatpush.msra.mxu0 0.0
    %1108 = vmatpush.msra.mxu0 0.0
    %1109 = vmatpush.msra.mxu0 0.0
    %1110 = vmatpush.msra.mxu0 0.0
    %1111 = vmatpush.msra.mxu0 0.0
    %1112 = vmatpush.msra.mxu0 0.0
    %1113 = vmatpush.msra.mxu0 0.0
    %1114 = vmatpush.msra.mxu0 0.0
    %1115 = vmatpush.msra.mxu0 %v990
    %1116 = vmatmul.f32.gmra.mxu0 %v1098
    %v1117 = vpop.f32.mrf.mxu0
    %v1118 = vadd.f32 0.0, %v1117
    %1119 = vdwg.mxu0
    %v1121 = vsel %vm159, %v1096, 0
    %1123 = vmatpush.msra.mxu0 0.0
    %1124 = vmatpush.msra.mxu0 0.0
    %1125 = vmatpush.msra.mxu0 0.0
    %1126 = vmatpush.msra.mxu0 0.0
    %1127 = vmatpush.msra.mxu0 0.0
    %1128 = vmatpush.msra.mxu0 0.0
    %1129 = vmatpush.msra.mxu0 0.0
    %1130 = vmatpush.msra.mxu0 0.0
    %1131 = vmatpush.msra.mxu0 0.0
    %1132 = vmatpush.msra.mxu0 0.0
    %1133 = vmatpush.msra.mxu0 0.0
    %1134 = vmatpush.msra.mxu0 0.0
    %1135 = vmatpush.msra.mxu0 0.0
    %1136 = vmatpush.msra.mxu0 0.0
    %1137 = vmatpush.msra.mxu0 0.0
    %1138 = vmatpush.msra.mxu0 %v993
    %1139 = vmatmul.f32.gmra.mxu0 %v1121
    %v1140 = vpop.f32.mrf.mxu0
    %v1141 = vadd.f32 0.0, %v1140
    %1142 = vdwg.mxu0
    %s1143 = scalar_lea.vmem %s7, 24
    %v1144 = vld [vmem:[%s1143] sm:$0xff]
    %v1146 = vsel %vm159, %v1118, 0
    %v1149 = vsel %vm159, %v1141, 0
    %1151 = vmatpush.msra.mxu0 0.0
    %1152 = vmatpush.msra.mxu0 0.0
    %1153 = vmatpush.msra.mxu0 0.0
    %1154 = vmatpush.msra.mxu0 0.0
    %1155 = vmatpush.msra.mxu0 0.0
    %1156 = vmatpush.msra.mxu0 0.0
    %1157 = vmatpush.msra.mxu0 0.0
    %1158 = vmatpush.msra.mxu0 0.0
    %1159 = vmatpush.msra.mxu0 0.0
    %1160 = vmatpush.msra.mxu0 0.0
    %1161 = vmatpush.msra.mxu0 0.0
    %1162 = vmatpush.msra.mxu0 0.0
    %1163 = vmatpush.msra.mxu0 0.0
    %1164 = vmatpush.msra.mxu0 0.0
    %1165 = vmatpush.msra.mxu0 0.0
    %1166 = vmatpush.msra.mxu0 %v1144
    %1167 = vmatmul.f32.gmra.mxu0 %v1146
    %v1168 = vpop.f32.mrf.mxu0
    %v1169 = vadd.f32 0.0, %v1168
    %1170 = vmatmul.f32.gmra.mxu0 %v1149
    %v1171 = vpop.f32.mrf.mxu0
    %v1172 = vadd.f32 0.0, %v1171
    %1173 = vdwg.mxu0
    %v1174 = vadd.f32 %v894, %v1169
    %v1175 = vadd.f32 %v895, %v1172
    %v1176 = vld [vmem:[%s8] sm:$0x1]
    %v1178 = vperm.slane %v1176, 0
    %v1180 = vadd.f32 %v1174, %v1178
    %v1181 = vadd.f32 %v1175, %v1178
    %v1182 = vadd.f32 %v57, %v1180
    %v1183 = vadd.f32 %v58, %v1181
    %v1184 = vsel %vm67, %v1182, 0.0
    %1185 = vadd.xlane.f32.xlu0 %v1184
    %v1186 = vpop.xlane.xlu0 %1185
    %v1187 = vsel %vm67, %v1183, 0.0
    %1188 = vadd.xlane.f32.xlu0 %v1187
    %v1189 = vpop.xlane.xlu0 %1188
    %v1190 = vrcp.pop 32.0
    %v1191 = vmul.f32 32.0, %v1190
    %v1192 = vsub.f32 1.0, %v1191
    %v1193 = vmul.f32 %v1190, %v1192
    %v1194 = vadd.f32 %v1190, %v1193
    %vm1195 = vweird.f32 %v1190
    %v1196 = vsel %vm1195, %v1190, %v1194
    %v1197 = vmul.f32 %v1186, %v1196
    %v1198 = vmul.f32 %v1189, %v1196
    %v1199 = vsub.f32 %v1182, %v1197
    %v1200 = vsub.f32 %v1183, %v1198
    %v1201 = vmul.f32 %v1199, %v1199
    %v1202 = vmul.f32 %v1200, %v1200
    %v1203 = vsel %vm67, %v1201, 0.0
    %1204 = vadd.xlane.f32.xlu0 %v1203
    %v1205 = vpop.xlane.xlu0 %1204
    %v1206 = vsel %vm67, %v1202, 0.0
    %1207 = vadd.xlane.f32.xlu0 %v1206
    %v1208 = vpop.xlane.xlu0 %1207
    %v1209 = vmul.f32 %v1205, %v1196
    %v1210 = vmul.f32 %v1208, %v1196
    %v1211 = vadd.f32 %v1209, 1e-05
    %v1212 = vadd.f32 %v1210, 1e-05
    %v1213 = vrsqrt.pop %v1211
    %v1214 = vmul.f32 %v1213, %v1211
    %v1215 = vmul.f32 %v1214, %v1213
    %v1216 = vmul.f32 0.5, %v1215
    %v1217 = vsub.f32 1.5, %v1216
    %v1218 = vmul.f32 %v1213, %v1217
    %vm1219 = vweird.f32 %v1211
    %vm1220 = vweird.f32 %v1213
    %vm1221 = vmor %vm1219, %vm1220
    %v1222 = vsel %vm1221, %v1213, %v1218
    %v1223 = vrsqrt.pop %v1212
    %v1224 = vmul.f32 %v1223, %v1212
    %v1225 = vmul.f32 %v1224, %v1223
    %v1226 = vmul.f32 0.5, %v1225
    %v1227 = vsub.f32 1.5, %v1226
    %v1228 = vmul.f32 %v1223, %v1227
    %vm1229 = vweird.f32 %v1212
    %vm1230 = vweird.f32 %v1223
    %vm1231 = vmor %vm1229, %vm1230
    %v1232 = vsel %vm1231, %v1223, %v1228
    %v1233 = vmul.f32 %v1199, %v1222
    %v1234 = vmul.f32 %v1200, %v1232
    %v1235 = vld [vmem:[%s9] sm:$0x1]
    %v1237 = vperm.slane %v1235, 0
    %v1239 = vmul.f32 %v1233, %v1237
    %v1240 = vmul.f32 %v1234, %v1237
    %v1241 = vld [vmem:[%s10] sm:$0x1]
    %v1243 = vperm.slane %v1241, 0
    %v1245 = vadd.f32 %v1239, %v1243
    %v1246 = vadd.f32 %v1240, %v1243
    %v1247 = vld [vmem:[%s11] sm:$0xff]
    %v1248 = vld [vmem:[%s11 + $0x8] sm:$0xff]
    %v1249 = vld [vmem:[%s11 + $0x10] sm:$0xff]
    %v1250 = vld [vmem:[%s11 + $0x18] sm:$0xff]
    %v1251 = vld [vmem:[%s12] sm:$0x1]
    %v1253 = vperm.slane %v1251, 0
    %v1256 = vsel %vm67, %v1245, 0
    %v1259 = vsel %vm67, %v1246, 0
    %1261 = vmatpush.msra.mxu0 0.0
    %1262 = vmatpush.msra.mxu0 0.0
    %1263 = vmatpush.msra.mxu0 0.0
    %1264 = vmatpush.msra.mxu0 0.0
    %1265 = vmatpush.msra.mxu0 0.0
    %1266 = vmatpush.msra.mxu0 0.0
    %1267 = vmatpush.msra.mxu0 0.0
    %1268 = vmatpush.msra.mxu0 0.0
    %1269 = vmatpush.msra.mxu0 0.0
    %1270 = vmatpush.msra.mxu0 0.0
    %1271 = vmatpush.msra.mxu0 0.0
    %1272 = vmatpush.msra.mxu0 0.0
    %1273 = vmatpush.msra.mxu0 %v1250
    %1274 = vmatpush.msra.mxu0 %v1249
    %1275 = vmatpush.msra.mxu0 %v1248
    %1276 = vmatpush.msra.mxu0 %v1247
    %1277 = vmatmul.f32.gmra.mxu0 %v1256
    %v1278 = vpop.f32.mrf.mxu0
    %v1279 = vadd.f32 %v1253, %v1278
    %1280 = vmatmul.f32.gmra.mxu0 %v1259
    %v1281 = vpop.f32.mrf.mxu0
    %v1282 = vadd.f32 %v1253, %v1281
    %1283 = vdwg.mxu0
    %v1284 = vmax.f32 %v1279, 0.0
    %v1285 = vmax.f32 %v1282, 0.0
    %v1286 = vld [vmem:[%s13] sm:$0xff]
    %v1287 = vld [vmem:[%s13 + $0x8] sm:$0xff]
    %v1288 = vld [vmem:[%s13 + $0x10] sm:$0xff]
    %v1289 = vld [vmem:[%s13 + $0x18] sm:$0xff]
    %v1290 = vld [vmem:[%s13 + $0x20] sm:$0xff]
    %v1291 = vld [vmem:[%s13 + $0x28] sm:$0xff]
    %v1292 = vld [vmem:[%s13 + $0x30] sm:$0xff]
    %v1293 = vld [vmem:[%s13 + $0x38] sm:$0xff]
    %v1294 = vld [vmem:[%s14] sm:$0x1]
    %v1296 = vperm.slane %v1294, 0
    %vm1298 = vcmask 523264
    %v1300 = vsel %vm1298, %v1284, 0
    %v1303 = vsel %vm1298, %v1285, 0
    %1305 = vmatpush.msra.mxu0 0.0
    %1306 = vmatpush.msra.mxu0 0.0
    %1307 = vmatpush.msra.mxu0 0.0
    %1308 = vmatpush.msra.mxu0 0.0
    %1309 = vmatpush.msra.mxu0 0.0
    %1310 = vmatpush.msra.mxu0 0.0
    %1311 = vmatpush.msra.mxu0 0.0
    %1312 = vmatpush.msra.mxu0 0.0
    %1313 = vmatpush.msra.mxu0 %v1293
    %1314 = vmatpush.msra.mxu0 %v1292
    %1315 = vmatpush.msra.mxu0 %v1291
    %1316 = vmatpush.msra.mxu0 %v1290
    %1317 = vmatpush.msra.mxu0 %v1289
    %1318 = vmatpush.msra.mxu0 %v1288
    %1319 = vmatpush.msra.mxu0 %v1287
    %1320 = vmatpush.msra.mxu0 %v1286
    %1321 = vmatmul.f32.gmra.mxu0 %v1300
    %v1322 = vpop.f32.mrf.mxu0
    %v1323 = vadd.f32 %v1296, %v1322
    %1324 = vmatmul.f32.gmra.mxu0 %v1303
    %v1325 = vpop.f32.mrf.mxu0
    %v1326 = vadd.f32 %v1296, %v1325
    %1327 = vdwg.mxu0
    %v1328 = vadd.f32 %v1245, %v1323
    %v1329 = vadd.f32 %v1246, %v1326
    %v1330 = vsel %vm67, %v1328, 0.0
    %1331 = vadd.xlane.f32.xlu0 %v1330
    %v1332 = vpop.xlane.xlu0 %1331
    %v1333 = vsel %vm67, %v1329, 0.0
    %1334 = vadd.xlane.f32.xlu0 %v1333
    %v1335 = vpop.xlane.xlu0 %1334
    %v1336 = vmul.f32 %v1332, %v1196
    %v1337 = vmul.f32 %v1335, %v1196
    %v1338 = vsub.f32 %v1328, %v1336
    %v1339 = vsub.f32 %v1329, %v1337
    %v1340 = vmul.f32 %v1338, %v1338
    %v1341 = vmul.f32 %v1339, %v1339
    %v1342 = vsel %vm67, %v1340, 0.0
    %1343 = vadd.xlane.f32.xlu0 %v1342
    %v1344 = vpop.xlane.xlu0 %1343
    %v1345 = vsel %vm67, %v1341, 0.0
    %1346 = vadd.xlane.f32.xlu0 %v1345
    %v1347 = vpop.xlane.xlu0 %1346
    %v1348 = vmul.f32 %v1344, %v1196
    %v1349 = vmul.f32 %v1347, %v1196
    %v1350 = vadd.f32 %v1348, 1e-05
    %v1351 = vadd.f32 %v1349, 1e-05
    %v1352 = vrsqrt.pop %v1350
    %v1353 = vmul.f32 %v1352, %v1350
    %v1354 = vmul.f32 %v1353, %v1352
    %v1355 = vmul.f32 0.5, %v1354
    %v1356 = vsub.f32 1.5, %v1355
    %v1357 = vmul.f32 %v1352, %v1356
    %vm1358 = vweird.f32 %v1350
    %vm1359 = vweird.f32 %v1352
    %vm1360 = vmor %vm1358, %vm1359
    %v1361 = vsel %vm1360, %v1352, %v1357
    %v1362 = vrsqrt.pop %v1351
    %v1363 = vmul.f32 %v1362, %v1351
    %v1364 = vmul.f32 %v1363, %v1362
    %v1365 = vmul.f32 0.5, %v1364
    %v1366 = vsub.f32 1.5, %v1365
    %v1367 = vmul.f32 %v1362, %v1366
    %vm1368 = vweird.f32 %v1351
    %vm1369 = vweird.f32 %v1362
    %vm1370 = vmor %vm1368, %vm1369
    %v1371 = vsel %vm1370, %v1362, %v1367
    %v1372 = vmul.f32 %v1338, %v1361
    %v1373 = vmul.f32 %v1339, %v1371
    %v1374 = vld [vmem:[%s15] sm:$0x1]
    %v1376 = vperm.slane %v1374, 0
    %v1378 = vmul.f32 %v1372, %v1376
    %v1379 = vmul.f32 %v1373, %v1376
    %v1380 = vld [vmem:[%s16] sm:$0x1]
    %v1382 = vperm.slane %v1380, 0
    %v1384 = vadd.f32 %v1378, %v1382
    %v1385 = vadd.f32 %v1379, %v1382
    %1386 = vst.msk [vmem:[#allocation2] sm:$0xff] %vm67, %v1384
    %1387 = vst.msk [vmem:[#allocation2 + $0x8] sm:$0xff] %vm67, %v1385
    // Predicated region
    $region70: #{tpu_custom_call.1} parent=1 // pred_check
      _
    $region71: #{tpu_custom_call.1} parent=1 // pred_check_branch
      %1389 = sbr.rel (0) target = $region73
    $region72: #{tpu_custom_call.1} parent=1 // pred_region
      %1391 = vsyncadd [#allocation3], 0
      %s1392 = sshll.u32 [#allocation2], 4
      %s1393 = int_to_ptr.vmem [resolvable:$true] %s1392
      %s1394 = sshll.u32 %s17, 4
      %s1395 = int_to_ptr.hbm [resolvable:$true] %s1394
      %1400 = dma.vmem_to_hbm [thread:$0]  %s1393, 256, %s1395, [#allocation3], 128, 128, 8
    $region73: #{tpu_custom_call.1} parent=1 // pred_fallthru
      _
    // Predicated region
    $region74: #{tpu_custom_call.1} parent=1 // pred_check
      _
    $region75: #{tpu_custom_call.1} parent=1 // pred_check_branch
      %1402 = sbr.rel (0) target = $region77
    $region76: #{tpu_custom_call.1} parent=1 // pred_region
      %1404 = dma.done [#allocation3], 256
    $region77: #{tpu_custom_call.1} parent=1 // pred_fallthru
      _
    %1405 = vsyncpa [#allocation3], 1

</llo_original>
